<compile_context>
chip_gen: v7x
topology: tpu7x:2x2x1
jax: 0.10.0
libtpu: 0.0.40
codegen_flags: <defaults>
</compile_context>

<pallas_src>
import functools

import jax
import jax.numpy as jnp
from jax import lax
from jax.experimental import pallas as pl
from jax.experimental.pallas import tpu as pltpu

EPS = 1e-6
_LANE = 128
_SUBLANE = 8
_MiB = 1024 * 1024


def _round_up(x, m):
    return ((x + m - 1) // m) * m


def _vmem_limit(nbytes):
    """Explicit scoped-VMEM request with headroom, kept in a range that is safe
    on v5e (16 MiB default scoped), v6e (128 MiB phys) and v7x (64 MiB phys)."""
    return int(min(max(2 * nbytes, 32 * _MiB), 64 * _MiB))


# --------------------------- pass 1a: batched moments ---------------------------
def _moments_kernel(za_ref, zb_ref, sa_ref, qa_ref, sb_ref, qb_ref):
    """Accumulate per-feature sum and sum-of-squares over the batch axis."""
    k = pl.program_id(1)

    @pl.when(k == 0)
    def _():
        sa_ref[...] = jnp.zeros_like(sa_ref)
        qa_ref[...] = jnp.zeros_like(qa_ref)
        sb_ref[...] = jnp.zeros_like(sb_ref)
        qb_ref[...] = jnp.zeros_like(qb_ref)

    za = za_ref[...].astype(jnp.float32)      # (block_n, block_d); pad rows are 0
    zb = zb_ref[...].astype(jnp.float32)
    sa_ref[...] += jnp.sum(za, axis=0, keepdims=True)
    qa_ref[...] += jnp.sum(za * za, axis=0, keepdims=True)
    sb_ref[...] += jnp.sum(zb, axis=0, keepdims=True)
    qb_ref[...] += jnp.sum(zb * zb, axis=0, keepdims=True)


# ------------------- pass 1b: pre-normalized operands + diag(c) ------------------
def _normalize_kernel(za_ref, zb_ref, p_ref, zan_ref, zbn_ref, diag_ref,
                      *, n_true, n_padded):
    """Write normalized (bf16) operands with pad rows zeroed; accumulate diag(c)."""
    k = pl.program_id(1)
    block_n = za_ref.shape[0]

    @pl.when(k == 0)
    def _():
        diag_ref[...] = jnp.zeros_like(diag_ref)

    p = p_ref[...]                                          # (4, block_d) f32
    a = za_ref[...].astype(jnp.float32) * p[0:1, :] + p[1:2, :]
    b = zb_ref[...].astype(jnp.float32) * p[2:3, :] + p[3:4, :]

    if n_padded > n_true:
        # Zero padded batch rows exactly here (once, O(N*D)) so the hot O(N*D^2)
        # matmul pass needs no mask at all.  Padded feature columns are already
        # exact zeros because their mean is 0 => shift is -0.0.
        row = lax.broadcasted_iota(jnp.int32, a.shape, 0) + k * block_n
        valid = row < n_true
        a = jnp.where(valid, a, 0.0)
        b = jnp.where(valid, b, 0.0)

    a_q = a.astype(zan_ref.dtype)
    b_q = b.astype(zbn_ref.dtype)
    zan_ref[...] = a_q
    zbn_ref[...] = b_q

    # diag(c) from exactly the rounded operands the matmul pass consumes, so
    # off_diag = sum(c^2) - sum(diag^2) stays consistent under bf16 operands.
    diag_ref[...] += jnp.sum(a_q.astype(jnp.float32) * b_q.astype(jnp.float32),
                             axis=0, keepdims=True)


# ----------------------- pass 2: tiled cross-correlation ------------------------
def _cross_corr_kernel(zan_ref, zbn_ref, csq_ref, acc_ref):
    """Accumulate one (block_d, block_d) block of c over the batch; emit sum(c^2)."""
    k = pl.program_id(2)

    @pl.when(k == 0)
    def _():
        acc_ref[...] = jnp.zeros_like(acc_ref)

    # zan^T @ zbn on the MXU (bf16 in, f32 accumulate), contracting the batch
    # axis directly so no transpose is materialized.  No normalize / cast /
    # mask work here -- operands were prepared once in pass 1b.
    acc_ref[...] += lax.dot_general(
        zan_ref[...], zbn_ref[...],
        dimension_numbers=(((0,), (0,)), ((), ())),
        preferred_element_type=jnp.float32)

    @pl.when(k == pl.num_programs(2) - 1)
    def _():
        # sum(c^2) of this block, reduced in sublane-sized chunks so the
        # epilogue never materializes a (block_d, block_d) temporary.
        block_d = acc_ref.shape[0]

        def body(r, partial):
            start = pl.multiple_of(r * _SUBLANE, _SUBLANE)
            blk = acc_ref[pl.ds(start, _SUBLANE), :]
            return partial + jnp.sum(blk * blk, axis=0, keepdims=True)

        rows = lax.fori_loop(0, block_d // _SUBLANE, body,
                             jnp.zeros((1, block_d), jnp.float32))
        # Lane-dense store: one (8, block_d) broadcast row per output block.
        csq_ref[...] = jnp.broadcast_to(rows, csq_ref.shape)


def barlow_twins_loss(z_a, z_b, lambda_param=0.005, *,
                      block_d=1024, block_n=512,
                      operand_dtype=jnp.bfloat16):
    """Barlow Twins loss. Returns (total_loss, losses_dict) with jnp scalars."""
    assert z_a.ndim == 2 and z_a.shape == z_b.shape
    n, d = z_a.shape
    assert n >= 2, "unbiased std requires at least 2 samples"

    # --- tiling / padding: feature dim -> lanes (x128), batch dim -> MXU K (x8) ---
    # block_d default 1024: compute-bound with bf16 operands on v5e/v6e and still
    # inside the v7x 64 MiB per-TC VMEM budget (acc scratch 4 MiB).  Raise to
    # 2048 on v6e only (re-check vmem).
    block_d = max(_LANE, _round_up(min(block_d, _round_up(d, _LANE)), _LANE))
    block_n = max(_SUBLANE, _round_up(min(block_n, _round_up(n, _SUBLANE)), _SUBLANE))
    d_pad = _round_up(d, block_d)
    n_pad = _round_up(n, block_n)
    if (d_pad != d) or (n_pad != n):
        # TODO(synk): fold this pad into pass 1 (mask on true n/d inside the
        # kernels) to save one extra HBM round-trip of the raw inputs when the
        # shapes are unaligned.
        z_a = jnp.pad(z_a, ((0, n_pad - n), (0, d_pad - d)))
        z_b = jnp.pad(z_b, ((0, n_pad - n), (0, d_pad - d)))

    gd = d_pad // block_d
    gn = n_pad // block_n
    in_item = jnp.dtype(z_a.dtype).itemsize
    op_item = jnp.dtype(operand_dtype).itemsize

    col_in_specs = [pl.BlockSpec((block_n, block_d), lambda i, k: (k, i)),
                    pl.BlockSpec((block_n, block_d), lambda i, k: (k, i))]
    vec_spec = pl.BlockSpec((1, block_d), lambda i, k: (0, i))
    vec_shape = jax.ShapeDtypeStruct((1, d_pad), jnp.float32)

    # ------------------------------ pass 1a: moments -----------------------------
    moments_vmem = (2 * 2 * block_n * block_d * in_item    # double-buffered inputs
                    + 2 * block_n * block_d * 4            # f32 temporaries
                    + 4 * 2 * block_d * 4)                 # accumulator vectors
    sa, qa, sb, qb = pl.pallas_call(
        _moments_kernel,
        grid=(gd, gn),
        in_specs=col_in_specs,
        out_specs=[vec_spec] * 4,
        out_shape=[vec_shape] * 4,
        compiler_params=pltpu.CompilerParams(
            dimension_semantics=("parallel", "arbitrary"),
            vmem_limit_bytes=_vmem_limit(moments_vmem)),
    )(z_a, z_b)

    # mean / unbiased std (torch.std) / fused scale+shift: O(D) glue, f32.
    inv_n = 1.0 / n
    mean_a, mean_b = sa * inv_n, sb * inv_n
    var_a = jnp.maximum(qa - n * mean_a * mean_a, 0.0) / (n - 1)
    var_b = jnp.maximum(qb - n * mean_b * mean_b, 0.0) / (n - 1)
    rstd_a = 1.0 / (jnp.sqrt(var_a) + EPS)
    rstd_b = 1.0 / (jnp.sqrt(var_b) + EPS)
    # Fold the 1/N of c = zan^T zbn / N into the A-side scale/shift.  Padded
    # feature columns get scale*0 + (-0.0), i.e. exactly zero after rounding.
    params = jnp.concatenate(
        [rstd_a * inv_n, -mean_a * rstd_a * inv_n, rstd_b, -mean_b * rstd_b],
        axis=0).astype(jnp.float32)                          # (4, d_pad), 1 stream

    # --------------------- pass 1b: pre-normalized bf16 operands -----------------
    norm_vmem = (2 * 2 * block_n * block_d * in_item
                 + 2 * 2 * block_n * block_d * op_item
                 + 4 * block_n * block_d * 4
                 + 2 * 4 * block_d * 4 + 2 * block_d * 4)
    zan, zbn, diag = pl.pallas_call(
        functools.partial(_normalize_kernel, n_true=n, n_padded=n_pad),
        grid=(gd, gn),
        in_specs=col_in_specs + [pl.BlockSpec((4, block_d), lambda i, k: (0, i))],
        out_specs=[pl.BlockSpec((block_n, block_d), lambda i, k: (k, i)),
                   pl.BlockSpec((block_n, block_d), lambda i, k: (k, i)),
                   vec_spec],
        out_shape=[jax.ShapeDtypeStruct((n_pad, d_pad), operand_dtype),
                   jax.ShapeDtypeStruct((n_pad, d_pad), operand_dtype),
                   vec_shape],
        compiler_params=pltpu.CompilerParams(
            dimension_semantics=("parallel", "arbitrary"),
            vmem_limit_bytes=_vmem_limit(norm_vmem)),
    )(z_a, z_b, params)

    # ----------------------- pass 2: tiled cross-correlation ---------------------
    gi = gj = gd
    gk = gn
    # NOTE: if the k-axis DMA is still exposed after enlarging tiles, add
    # pipeline_mode=pl.Buffered(3) on the two operand BlockSpecs below (costs
    # one extra operand tile of VMEM each; re-check the v7x 64 MiB budget).
    corr_vmem = (2 * block_d * block_d * 4                  # acc scratch + matmul temp
                 + 2 * 2 * block_n * block_d * op_item      # double-buffered operands
                 + 2 * _SUBLANE * block_d * 4)              # csq output
    csq_rows = pl.pallas_call(
        _cross_corr_kernel,
        grid=(gi, gj, gk),
        in_specs=[
            pl.BlockSpec((block_n, block_d), lambda i, j, k: (k, i)),  # zan tile
            pl.BlockSpec((block_n, block_d), lambda i, j, k: (k, j)),  # zbn tile
        ],
        out_specs=pl.BlockSpec((_SUBLANE, block_d), lambda i, j, k: (i, j)),
        out_shape=jax.ShapeDtypeStruct((gi * _SUBLANE, d_pad), jnp.float32),
        scratch_shapes=[pltpu.VMEM((block_d, block_d), jnp.float32)],
        compiler_params=pltpu.CompilerParams(
            dimension_semantics=("parallel", "parallel", "arbitrary"),
            vmem_limit_bytes=_vmem_limit(corr_vmem)),
    )(zan, zbn)

    # ------------------------------ final reductions -----------------------------
    diag_v = diag[0, :d]                           # padded features excluded
    csq_total = jnp.sum(csq_rows[::_SUBLANE, :])   # sum(c^2); padded entries are 0
    on_diag = jnp.sum((diag_v - 1.0) ** 2)
    off_diag = csq_total - jnp.sum(diag_v * diag_v)
    total = on_diag + lambda_param * off_diag
    losses = {
        "on_diag_loss": on_diag,   # jnp scalars: no host sync, jit/grad friendly
        "off_diag_loss": off_diag,
        "total_loss": total,
    }
    return total, losses


if __name__ == "__main__":
    key = jax.random.PRNGKey(0)
    ka, kb = jax.random.split(key)

    def reference(z_a, z_b, lam=0.005):
        nn = z_a.shape[0]
        mean_a = z_a.mean(axis=0)
        mean_b = z_b.mean(axis=0)
        std_a = jnp.sqrt(jnp.sum((z_a - mean_a) ** 2, axis=0) / (nn - 1))
        std_b = jnp.sqrt(jnp.sum((z_b - mean_b) ** 2, axis=0) / (nn - 1))
        zan = (z_a - mean_a) / (std_a + EPS)
        zbn = (z_b - mean_b) / (std_b + EPS)
        c = zan.T @ zbn / nn
        dg = jnp.diag(c)
        on = jnp.sum((dg - 1.0) ** 2)
        off = jnp.sum(c ** 2) - jnp.sum(dg * dg)
        return on + lam * off, on, off

    # Two configs: the default bf16-operand MXU path (looser tolerance) and an
    # f32-operand path (tight tolerance, exercises multi-step k accumulation).
    configs = [
        (jnp.bfloat16, 16, 2e-2),
        (jnp.float32, 8, 2e-3),
    ]
    for op_dtype, bn, tol in configs:
        loss_fn = jax.jit(functools.partial(
            barlow_twins_loss, block_d=128, block_n=bn, operand_dtype=op_dtype))
        # second case exercises the batch/feature padding + masking paths
        for idx, (n, d) in enumerate([(16, 256), (12, 200)]):
            z_a = jax.random.normal(jax.random.fold_in(ka, idx), (n, d), jnp.float32)
            z_b = jax.random.normal(jax.random.fold_in(kb, idx), (n, d), jnp.float32)

            total, losses = loss_fn(z_a, z_b)
            total = jax.block_until_ready(total)

            ref_total, ref_on, ref_off = reference(z_a, z_b)
            assert jnp.allclose(total, ref_total, rtol=tol, atol=tol), (
                str(op_dtype), n, d, float(total), float(ref_total))
            assert jnp.allclose(losses["on_diag_loss"], ref_on, rtol=tol, atol=tol)
            assert jnp.allclose(losses["off_diag_loss"], ref_off, rtol=tol, atol=tol)

    print("KERNEL_OK")
</pallas_src>

<mosaic_0001>
module attributes {stable_mosaic.version = 11 : i64} {
  func.func @_moments_kernel(%arg0: i32, %arg1: i32, %arg2: memref<16x128xf32, #tpu.memory_space<vmem>>, %arg3: memref<16x128xf32, #tpu.memory_space<vmem>>, %arg4: memref<1x128xf32, #tpu.memory_space<vmem>>, %arg5: memref<1x128xf32, #tpu.memory_space<vmem>>, %arg6: memref<1x128xf32, #tpu.memory_space<vmem>>, %arg7: memref<1x128xf32, #tpu.memory_space<vmem>>) attributes {dimension_semantics = [#tpu.dimension_semantics<parallel>, #tpu.dimension_semantics<arbitrary>], iteration_bounds = array<i64: 2, 1>, scalar_prefetch = 0 : i64, scratch_operands = 0 : i64, tpu.core_type = #tpu.core_type<tc>, window_params = [{transform_indices = @transform_0, window_bounds = array<i64: 16, 128>}, {transform_indices = @transform_1, window_bounds = array<i64: 16, 128>}, {transform_indices = @transform_2, window_bounds = array<i64: 1, 128>}, {transform_indices = @transform_3, window_bounds = array<i64: 1, 128>}, {transform_indices = @transform_4, window_bounds = array<i64: 1, 128>}, {transform_indices = @transform_5, window_bounds = array<i64: 1, 128>}]} {
    %c0_i32 = arith.constant 0 : i32
    %0 = arith.cmpi eq, %arg1, %c0_i32 : i32
    %1 = arith.extui %0 : i1 to i32
    %c0_i32_0 = arith.constant 0 : i32
    %2 = arith.cmpi ne, %1, %c0_i32_0 : i32
    scf.if %2 {
      %cst_23 = arith.constant 0.000000e+00 : f32
      %27 = vector.broadcast %cst_23 : f32 to vector<1x128xf32>
      %c0_24 = arith.constant 0 : index
      %c0_25 = arith.constant 0 : index
      %28 = vector.load %arg4[%c0_24, %c0_25] : memref<1x128xf32, #tpu.memory_space<vmem>>, vector<1x128xf32>
      tpu.vector_store %arg4[%c0_24, %c0_25], %27 {strides = array<i32>} : memref<1x128xf32, #tpu.memory_space<vmem>>, vector<1x128xf32>,
      %cst_26 = arith.constant 0.000000e+00 : f32
      %29 = vector.broadcast %cst_26 : f32 to vector<1x128xf32>
      %c0_27 = arith.constant 0 : index
      %c0_28 = arith.constant 0 : index
      %30 = vector.load %arg5[%c0_27, %c0_28] : memref<1x128xf32, #tpu.memory_space<vmem>>, vector<1x128xf32>
      tpu.vector_store %arg5[%c0_27, %c0_28], %29 {strides = array<i32>} : memref<1x128xf32, #tpu.memory_space<vmem>>, vector<1x128xf32>,
      %cst_29 = arith.constant 0.000000e+00 : f32
      %31 = vector.broadcast %cst_29 : f32 to vector<1x128xf32>
      %c0_30 = arith.constant 0 : index
      %c0_31 = arith.constant 0 : index
      %32 = vector.load %arg6[%c0_30, %c0_31] : memref<1x128xf32, #tpu.memory_space<vmem>>, vector<1x128xf32>
      tpu.vector_store %arg6[%c0_30, %c0_31], %31 {strides = array<i32>} : memref<1x128xf32, #tpu.memory_space<vmem>>, vector<1x128xf32>,
      %cst_32 = arith.constant 0.000000e+00 : f32
      %33 = vector.broadcast %cst_32 : f32 to vector<1x128xf32>
      %c0_33 = arith.constant 0 : index
      %c0_34 = arith.constant 0 : index
      %34 = vector.load %arg7[%c0_33, %c0_34] : memref<1x128xf32, #tpu.memory_space<vmem>>, vector<1x128xf32>
      tpu.vector_store %arg7[%c0_33, %c0_34], %33 {strides = array<i32>} : memref<1x128xf32, #tpu.memory_space<vmem>>, vector<1x128xf32>,
    } else {
    }
    %c0 = arith.constant 0 : index
    %c0_1 = arith.constant 0 : index
    %3 = vector.load %arg2[%c0, %c0_1] : memref<16x128xf32, #tpu.memory_space<vmem>>, vector<16x128xf32>
    %c0_2 = arith.constant 0 : index
    %c0_3 = arith.constant 0 : index
    %4 = vector.load %arg3[%c0_2, %c0_3] : memref<16x128xf32, #tpu.memory_space<vmem>>, vector<16x128xf32>
    %c0_4 = arith.constant 0 : index
    %c0_5 = arith.constant 0 : index
    %5 = vector.load %arg4[%c0_4, %c0_5] : memref<1x128xf32, #tpu.memory_space<vmem>>, vector<1x128xf32>
    %cst = arith.constant dense<0.000000e+00> : vector<128xf32>
    %6 = vector.multi_reduction <add>, %3, %cst [0] : vector<16x128xf32> to vector<128xf32>
    %7 = vector.shape_cast %6 : vector<128xf32> to vector<1x128xf32>
    %8 = arith.addf %5, %7 : vector<1x128xf32>
    %c0_6 = arith.constant 0 : index
    %c0_7 = arith.constant 0 : index
    %9 = vector.load %arg4[%c0_6, %c0_7] : memref<1x128xf32, #tpu.memory_space<vmem>>, vector<1x128xf32>
    tpu.vector_store %arg4[%c0_6, %c0_7], %8 {strides = array<i32>} : memref<1x128xf32, #tpu.memory_space<vmem>>, vector<1x128xf32>,
    %c0_8 = arith.constant 0 : index
    %c0_9 = arith.constant 0 : index
    %10 = vector.load %arg5[%c0_8, %c0_9] : memref<1x128xf32, #tpu.memory_space<vmem>>, vector<1x128xf32>
    %11 = arith.mulf %3, %3 : vector<16x128xf32>
    %cst_10 = arith.constant dense<0.000000e+00> : vector<128xf32>
    %12 = vector.multi_reduction <add>, %11, %cst_10 [0] : vector<16x128xf32> to vector<128xf32>
    %13 = vector.shape_cast %12 : vector<128xf32> to vector<1x128xf32>
    %14 = arith.addf %10, %13 : vector<1x128xf32>
    %c0_11 = arith.constant 0 : index
    %c0_12 = arith.constant 0 : index
    %15 = vector.load %arg5[%c0_11, %c0_12] : memref<1x128xf32, #tpu.memory_space<vmem>>, vector<1x128xf32>
    tpu.vector_store %arg5[%c0_11, %c0_12], %14 {strides = array<i32>} : memref<1x128xf32, #tpu.memory_space<vmem>>, vector<1x128xf32>,
    %c0_13 = arith.constant 0 : index
    %c0_14 = arith.constant 0 : index
    %16 = vector.load %arg6[%c0_13, %c0_14] : memref<1x128xf32, #tpu.memory_space<vmem>>, vector<1x128xf32>
    %cst_15 = arith.constant dense<0.000000e+00> : vector<128xf32>
    %17 = vector.multi_reduction <add>, %4, %cst_15 [0] : vector<16x128xf32> to vector<128xf32>
    %18 = vector.shape_cast %17 : vector<128xf32> to vector<1x128xf32>
    %19 = arith.addf %16, %18 : vector<1x128xf32>
    %c0_16 = arith.constant 0 : index
    %c0_17 = arith.constant 0 : index
    %20 = vector.load %arg6[%c0_16, %c0_17] : memref<1x128xf32, #tpu.memory_space<vmem>>, vector<1x128xf32>
    tpu.vector_store %arg6[%c0_16, %c0_17], %19 {strides = array<i32>} : memref<1x128xf32, #tpu.memory_space<vmem>>, vector<1x128xf32>,
    %c0_18 = arith.constant 0 : index
    %c0_19 = arith.constant 0 : index
    %21 = vector.load %arg7[%c0_18, %c0_19] : memref<1x128xf32, #tpu.memory_space<vmem>>, vector<1x128xf32>
    %22 = arith.mulf %4, %4 : vector<16x128xf32>
    %cst_20 = arith.constant dense<0.000000e+00> : vector<128xf32>
    %23 = vector.multi_reduction <add>, %22, %cst_20 [0] : vector<16x128xf32> to vector<128xf32>
    %24 = vector.shape_cast %23 : vector<128xf32> to vector<1x128xf32>
    %25 = arith.addf %21, %24 : vector<1x128xf32>
    %c0_21 = arith.constant 0 : index
    %c0_22 = arith.constant 0 : index
    %26 = vector.load %arg7[%c0_21, %c0_22] : memref<1x128xf32, #tpu.memory_space<vmem>>, vector<1x128xf32>
    tpu.vector_store %arg7[%c0_21, %c0_22], %25 {strides = array<i32>} : memref<1x128xf32, #tpu.memory_space<vmem>>, vector<1x128xf32>,
    return
  }
  func.func @transform_0(%arg0: i32, %arg1: i32) -> (i32, i32) {
    %c0_i32 = arith.constant 0 : i32
    return %arg1, %arg0 : i32, i32
  }
  func.func @transform_1(%arg0: i32, %arg1: i32) -> (i32, i32) {
    %c0_i32 = arith.constant 0 : i32
    return %arg1, %arg0 : i32, i32
  }
  func.func @transform_2(%arg0: i32, %arg1: i32) -> (i32, i32) {
    %c0_i32 = arith.constant 0 : i32
    %c0_i32_0 = arith.constant 0 : i32
    return %c0_i32, %arg0 : i32, i32
  }
  func.func @transform_3(%arg0: i32, %arg1: i32) -> (i32, i32) {
    %c0_i32 = arith.constant 0 : i32
    %c0_i32_0 = arith.constant 0 : i32
    return %c0_i32, %arg0 : i32, i32
  }
  func.func @transform_4(%arg0: i32, %arg1: i32) -> (i32, i32) {
    %c0_i32 = arith.constant 0 : i32
    %c0_i32_0 = arith.constant 0 : i32
    return %c0_i32, %arg0 : i32, i32
  }
  func.func @transform_5(%arg0: i32, %arg1: i32) -> (i32, i32) {
    %c0_i32 = arith.constant 0 : i32
    %c0_i32_0 = arith.constant 0 : i32
    return %c0_i32, %arg0 : i32, i32
  }
}

module attributes {stable_mosaic.version = 11 : i64} {
  func.func @_normalize_kernel(%arg0: i32, %arg1: i32, %arg2: memref<16x128xf32, #tpu.memory_space<vmem>>, %arg3: memref<16x128xf32, #tpu.memory_space<vmem>>, %arg4: memref<4x128xf32, #tpu.memory_space<vmem>>, %arg5: memref<16x128xbf16, #tpu.memory_space<vmem>>, %arg6: memref<16x128xbf16, #tpu.memory_space<vmem>>, %arg7: memref<1x128xf32, #tpu.memory_space<vmem>>) attributes {dimension_semantics = [#tpu.dimension_semantics<parallel>, #tpu.dimension_semantics<arbitrary>], iteration_bounds = array<i64: 2, 1>, scalar_prefetch = 0 : i64, scratch_operands = 0 : i64, tpu.core_type = #tpu.core_type<tc>, window_params = [{transform_indices = @transform_0, window_bounds = array<i64: 16, 128>}, {transform_indices = @transform_1, window_bounds = array<i64: 16, 128>}, {transform_indices = @transform_2, window_bounds = array<i64: 4, 128>}, {transform_indices = @transform_3, window_bounds = array<i64: 16, 128>}, {transform_indices = @transform_4, window_bounds = array<i64: 16, 128>}, {transform_indices = @transform_5, window_bounds = array<i64: 1, 128>}]} {
    %c0_i32 = arith.constant 0 : i32
    %0 = arith.cmpi eq, %arg1, %c0_i32 : i32
    %1 = arith.extui %0 : i1 to i32
    %c0_i32_0 = arith.constant 0 : i32
    %2 = arith.cmpi ne, %1, %c0_i32_0 : i32
    scf.if %2 {
      %cst_14 = arith.constant 0.000000e+00 : f32
      %30 = vector.broadcast %cst_14 : f32 to vector<1x128xf32>
      %c0_15 = arith.constant 0 : index
      %c0_16 = arith.constant 0 : index
      %31 = vector.load %arg7[%c0_15, %c0_16] : memref<1x128xf32, #tpu.memory_space<vmem>>, vector<1x128xf32>
      tpu.vector_store %arg7[%c0_15, %c0_16], %30 {strides = array<i32>} : memref<1x128xf32, #tpu.memory_space<vmem>>, vector<1x128xf32>,
    } else {
    }
    %c0 = arith.constant 0 : index
    %c0_1 = arith.constant 0 : index
    %3 = vector.load %arg4[%c0, %c0_1] : memref<4x128xf32, #tpu.memory_space<vmem>>, vector<4x128xf32>
    %c0_2 = arith.constant 0 : index
    %c0_3 = arith.constant 0 : index
    %4 = vector.load %arg2[%c0_2, %c0_3] : memref<16x128xf32, #tpu.memory_space<vmem>>, vector<16x128xf32>
    %5 = vector.extract_strided_slice %3 {offsets = [0, 0], sizes = [1, 128], strides = [1, 1]} : vector<4x128xf32> to vector<1x128xf32>
    %6 = vector.broadcast %5 : vector<1x128xf32> to vector<16x128xf32>
    %7 = arith.mulf %4, %6 : vector<16x128xf32>
    %8 = vector.extract_strided_slice %3 {offsets = [1, 0], sizes = [1, 128], strides = [1, 1]} : vector<4x128xf32> to vector<1x128xf32>
    %9 = vector.broadcast %8 : vector<1x128xf32> to vector<16x128xf32>
    %10 = arith.addf %7, %9 : vector<16x128xf32>
    %c0_4 = arith.constant 0 : index
    %c0_5 = arith.constant 0 : index
    %11 = vector.load %arg3[%c0_4, %c0_5] : memref<16x128xf32, #tpu.memory_space<vmem>>, vector<16x128xf32>
    %12 = vector.extract_strided_slice %3 {offsets = [2, 0], sizes = [1, 128], strides = [1, 1]} : vector<4x128xf32> to vector<1x128xf32>
    %13 = vector.broadcast %12 : vector<1x128xf32> to vector<16x128xf32>
    %14 = arith.mulf %11, %13 : vector<16x128xf32>
    %15 = vector.extract_strided_slice %3 {offsets = [3, 0], sizes = [1, 128], strides = [1, 1]} : vector<4x128xf32> to vector<1x128xf32>
    %16 = vector.broadcast %15 : vector<1x128xf32> to vector<16x128xf32>
    %17 = arith.addf %14, %16 : vector<16x128xf32>
    %18 = arith.truncf %10 : vector<16x128xf32> to vector<16x128xbf16>
    %19 = arith.truncf %17 : vector<16x128xf32> to vector<16x128xbf16>
    %c0_6 = arith.constant 0 : index
    %c0_7 = arith.constant 0 : index
    %20 = vector.load %arg5[%c0_6, %c0_7] : memref<16x128xbf16, #tpu.memory_space<vmem>>, vector<16x128xbf16>
    tpu.vector_store %arg5[%c0_6, %c0_7], %18 {strides = array<i32>} : memref<16x128xbf16, #tpu.memory_space<vmem>>, vector<16x128xbf16>,
    %c0_8 = arith.constant 0 : index
    %c0_9 = arith.constant 0 : index
    %21 = vector.load %arg6[%c0_8, %c0_9] : memref<16x128xbf16, #tpu.memory_space<vmem>>, vector<16x128xbf16>
    tpu.vector_store %arg6[%c0_8, %c0_9], %19 {strides = array<i32>} : memref<16x128xbf16, #tpu.memory_space<vmem>>, vector<16x128xbf16>,
    %c0_10 = arith.constant 0 : index
    %c0_11 = arith.constant 0 : index
    %22 = vector.load %arg7[%c0_10, %c0_11] : memref<1x128xf32, #tpu.memory_space<vmem>>, vector<1x128xf32>
    %23 = arith.extf %18 : vector<16x128xbf16> to vector<16x128xf32>
    %24 = arith.extf %19 : vector<16x128xbf16> to vector<16x128xf32>
    %25 = arith.mulf %23, %24 : vector<16x128xf32>
    %cst = arith.constant dense<0.000000e+00> : vector<128xf32>
    %26 = vector.multi_reduction <add>, %25, %cst [0] : vector<16x128xf32> to vector<128xf32>
    %27 = vector.shape_cast %26 : vector<128xf32> to vector<1x128xf32>
    %28 = arith.addf %22, %27 : vector<1x128xf32>
    %c0_12 = arith.constant 0 : index
    %c0_13 = arith.constant 0 : index
    %29 = vector.load %arg7[%c0_12, %c0_13] : memref<1x128xf32, #tpu.memory_space<vmem>>, vector<1x128xf32>
    tpu.vector_store %arg7[%c0_12, %c0_13], %28 {strides = array<i32>} : memref<1x128xf32, #tpu.memory_space<vmem>>, vector<1x128xf32>,
    return
  }
  func.func @transform_0(%arg0: i32, %arg1: i32) -> (i32, i32) {
    %c0_i32 = arith.constant 0 : i32
    return %arg1, %arg0 : i32, i32
  }
  func.func @transform_1(%arg0: i32, %arg1: i32) -> (i32, i32) {
    %c0_i32 = arith.constant 0 : i32
    return %arg1, %arg0 : i32, i32
  }
  func.func @transform_2(%arg0: i32, %arg1: i32) -> (i32, i32) {
    %c0_i32 = arith.constant 0 : i32
    %c0_i32_0 = arith.constant 0 : i32
    return %c0_i32, %arg0 : i32, i32
  }
  func.func @transform_3(%arg0: i32, %arg1: i32) -> (i32, i32) {
    %c0_i32 = arith.constant 0 : i32
    return %arg1, %arg0 : i32, i32
  }
  func.func @transform_4(%arg0: i32, %arg1: i32) -> (i32, i32) {
    %c0_i32 = arith.constant 0 : i32
    return %arg1, %arg0 : i32, i32
  }
  func.func @transform_5(%arg0: i32, %arg1: i32) -> (i32, i32) {
    %c0_i32 = arith.constant 0 : i32
    %c0_i32_0 = arith.constant 0 : i32
    return %c0_i32, %arg0 : i32, i32
  }
}

module attributes {stable_mosaic.version = 11 : i64} {
  func.func @_cross_corr_kernel(%arg0: i32, %arg1: i32, %arg2: i32, %arg3: memref<16x128xbf16, #tpu.memory_space<vmem>>, %arg4: memref<16x128xbf16, #tpu.memory_space<vmem>>, %arg5: memref<8x128xf32, #tpu.memory_space<vmem>>, %arg6: memref<128x128xf32, #tpu.memory_space<vmem>>) attributes {dimension_semantics = [#tpu.dimension_semantics<parallel>, #tpu.dimension_semantics<parallel>, #tpu.dimension_semantics<arbitrary>], iteration_bounds = array<i64: 2, 2, 1>, scalar_prefetch = 0 : i64, scratch_operands = 1 : i64, tpu.core_type = #tpu.core_type<tc>, window_params = [{transform_indices = @transform_0, window_bounds = array<i64: 16, 128>}, {transform_indices = @transform_1, window_bounds = array<i64: 16, 128>}, {transform_indices = @transform_2, window_bounds = array<i64: 8, 128>}]} {
    %c0_i32 = arith.constant 0 : i32
    %0 = arith.cmpi eq, %arg2, %c0_i32 : i32
    %1 = arith.extui %0 : i1 to i32
    %c0_i32_0 = arith.constant 0 : i32
    %2 = arith.cmpi ne, %1, %c0_i32_0 : i32
    scf.if %2 {
      %cst_10 = arith.constant 0.000000e+00 : f32
      %12 = vector.broadcast %cst_10 : f32 to vector<128x128xf32>
      %c0_11 = arith.constant 0 : index
      %c0_12 = arith.constant 0 : index
      %13 = vector.load %arg6[%c0_11, %c0_12] : memref<128x128xf32, #tpu.memory_space<vmem>>, vector<128x128xf32>
      tpu.vector_store %arg6[%c0_11, %c0_12], %12 {strides = array<i32>} : memref<128x128xf32, #tpu.memory_space<vmem>>, vector<128x128xf32>,
    } else {
    }
    %c0 = arith.constant 0 : index
    %c0_1 = arith.constant 0 : index
    %3 = vector.load %arg6[%c0, %c0_1] : memref<128x128xf32, #tpu.memory_space<vmem>>, vector<128x128xf32>
    %c0_2 = arith.constant 0 : index
    %c0_3 = arith.constant 0 : index
    %4 = vector.load %arg3[%c0_2, %c0_3] : memref<16x128xbf16, #tpu.memory_space<vmem>>, vector<16x128xbf16>
    %c0_4 = arith.constant 0 : index
    %c0_5 = arith.constant 0 : index
    %5 = vector.load %arg4[%c0_4, %c0_5] : memref<16x128xbf16, #tpu.memory_space<vmem>>, vector<16x128xbf16>
    %cst = arith.constant dense<0.000000e+00> : vector<128x128xf32>
    %6 = tpu.matmul %4, %5, %cst {dimension_numbers = #tpu.dot_dimension_numbers<[0], [0], [1], [1], [0, 1, 1, 1], [], []>} : vector<16x128xbf16>, vector<16x128xbf16>, vector<128x128xf32> -> vector<128x128xf32>
    %7 = arith.addf %3, %6 : vector<128x128xf32>
    %c0_6 = arith.constant 0 : index
    %c0_7 = arith.constant 0 : index
    %8 = vector.load %arg6[%c0_6, %c0_7] : memref<128x128xf32, #tpu.memory_space<vmem>>, vector<128x128xf32>
    tpu.vector_store %arg6[%c0_6, %c0_7], %7 {strides = array<i32>} : memref<128x128xf32, #tpu.memory_space<vmem>>, vector<128x128xf32>,
    %c0_i32_8 = arith.constant 0 : i32
    %9 = arith.cmpi eq, %arg2, %c0_i32_8 : i32
    %10 = arith.extui %9 : i1 to i32
    %c0_i32_9 = arith.constant 0 : i32
    %11 = arith.cmpi ne, %10, %c0_i32_9 : i32
    scf.if %11 {
      %cst_10 = arith.constant 0.000000e+00 : f32
      %12 = vector.broadcast %cst_10 : f32 to vector<1x128xf32>
      %c0_i32_11 = arith.constant 0 : i32
      %c16_i32 = arith.constant 16 : i32
      %13 = arith.addi %c0_i32_11, %c16_i32 : i32
      %c1_i32 = arith.constant 1 : i32
      %14 = scf.for %arg7 = %c0_i32_11 to %13 step %c1_i32 iter_args(%arg8 = %12) -> (vector<1x128xf32>)  : i32 {
        %c8_i32 = arith.constant 8 : i32
        %18 = arith.muli %arg7, %c8_i32 : i32
        %19 = tpu.assume_multiple %18, 8 : i32
        %20 = arith.index_cast %19 : i32 to index
        %c0_15 = arith.constant 0 : index
        %21 = vector.load %arg6[%20, %c0_15] : memref<128x128xf32, #tpu.memory_space<vmem>>, vector<8x128xf32>
        %22 = arith.mulf %21, %21 : vector<8x128xf32>
        %cst_16 = arith.constant dense<0.000000e+00> : vector<128xf32>
        %23 = vector.multi_reduction <add>, %22, %cst_16 [0] : vector<8x128xf32> to vector<128xf32>
        %24 = vector.shape_cast %23 : vector<128xf32> to vector<1x128xf32>
        %25 = arith.addf %arg8, %24 : vector<1x128xf32>
        scf.yield %25 : vector<1x128xf32>
      }
      %c16_i32_12 = arith.constant 16 : i32
      %15 = vector.shape_cast %14 : vector<1x128xf32> to vector<1x128xf32>
      %16 = vector.broadcast %15 : vector<1x128xf32> to vector<8x128xf32>
      %c0_13 = arith.constant 0 : index
      %c0_14 = arith.constant 0 : index
      %17 = vector.load %arg5[%c0_13, %c0_14] : memref<8x128xf32, #tpu.memory_space<vmem>>, vector<8x128xf32>
      tpu.vector_store %arg5[%c0_13, %c0_14], %16 {strides = array<i32>} : memref<8x128xf32, #tpu.memory_space<vmem>>, vector<8x128xf32>,
    } else {
    }
    return
  }
  func.func @transform_0(%arg0: i32, %arg1: i32, %arg2: i32) -> (i32, i32) {
    %c0_i32 = arith.constant 0 : i32
    return %arg2, %arg0 : i32, i32
  }
  func.func @transform_1(%arg0: i32, %arg1: i32, %arg2: i32) -> (i32, i32) {
    %c0_i32 = arith.constant 0 : i32
    return %arg2, %arg1 : i32, i32
  }
  func.func @transform_2(%arg0: i32, %arg1: i32, %arg2: i32) -> (i32, i32) {
    %c0_i32 = arith.constant 0 : i32
    return %arg0, %arg1 : i32, i32
  }
}

</mosaic_0001>

<llo_original>
// kernel: barlow_twins_loss.3
$region0: #{barlow_twins_loss.3}
  #allocation0 [shape = 'u32[]', space=smem, size = 0x4, offset = 0x4, fixed_abs, tag = 'smem constant byte address 0x4 - core index']
  #allocation1 [shape = 'u32[144,128]{1,0:T(1,128)}', space=vmem, size = 0x12000, scoped, tag = 'internal scratch']
  %s0 = inlined_call_operand.hbm [shape: f32[16,256], index: 0, kind: input, shape index: {}]
  %s1 = inlined_call_operand.hbm [shape: f32[16,256], index: 1, kind: input, shape index: {}]
  %s2 = inlined_call_operand.vmem [shape: f32[1,256], index: 2, kind: output, shape index: {0}]
  %s3 = inlined_call_operand.vmem [shape: f32[1,256], index: 3, kind: output, shape index: {1}]
  %s4 = inlined_call_operand.vmem [shape: f32[1,256], index: 4, kind: output, shape index: {2}]
  %s5 = inlined_call_operand.vmem [shape: f32[1,256], index: 5, kind: output, shape index: {3}]
  %6 = xla_tuple %s2, %s3, %s4, %s5
  %s7 = sld [smem:[#allocation0]]
  $region77: #{barlow_twins_loss.3} parent=0
    _
  %s9 = ssub.s32 1, %s7
  %s10 = scalar_select 0, %s9, %s7
  $region1: #{barlow_twins_loss.3} parent=0
    #allocation2 [shape = 'u8[16384]{0}', space=vmem, size = 0x4000, scoped, tag = 'input window, operand 0']
    #allocation3 [shape = 's32[2]{0}', space=sflag, size = 0x8, scoped, tag = 'scoped memory for barlow_twins_loss.3']
    #allocation4 [shape = 'u8[16384]{0}', space=vmem, size = 0x4000, scoped, tag = 'input window, operand 1']
    #allocation5 [shape = 's32[2]{0}', space=sflag, size = 0x8, scoped, tag = 'scoped memory for barlow_twins_loss.3']
    %11 = vsyncpa [#allocation3], 0
    %s12 = scalar_lea.sflag [#allocation3], 1
    %13 = vsyncpa %s12, 0
    %14 = vsyncpa [#allocation5], 0
    %s15 = scalar_lea.sflag [#allocation5], 1
    %16 = vsyncpa %s15, 0
    loop: start=0, step=1, limit=4
    $region2: #{barlow_twins_loss.3} parent=1 // loop_pre_header
      _
    $region3: #{barlow_twins_loss.3} parent=1 // loop_header
      %s18 = sphi 0, %s22
      %p19 = scmp.ge.s32.totalorder %s18, 4
      %s25 = sphi 0, %s37
      %s26 = sphi 0, %s33
      %s27 = sphi 0, %s25
      %s28 = sphi 0, %s26
      %s29 = sphi 0, %s27
      %s30 = sphi 0, %s28
      %s42 = sphi 0, %s44
      %s45 = sphi 0, %s42
      %s46 = sphi 0, %s45
      %s62 = sphi 0, %s46
      %s70 = sphi 0, %s72
      %s73 = sphi 0, %s70
      %s74 = sphi 0, %s73
      %s90 = sphi 0, %s74
      %s96 = sphi 0, %s98
      %s99 = sphi 0, %s96
      %s100 = sphi 0, %s99
      %s116 = sphi 0, %s100
      %s122 = sphi 0, %s124
      %s125 = sphi 0, %s122
      %s126 = sphi 0, %s125
      %s142 = sphi 0, %s126
      %s148 = sphi 0, %s150
      %s151 = sphi 0, %s148
      %s152 = sphi 0, %s151
      %s168 = sphi 0, %s152
      %s174 = sphi 0, %s176
      %s177 = sphi 0, %s174
      %s178 = sphi 0, %s177
      %s194 = sphi 0, %s178
    $region4: #{barlow_twins_loss.3} parent=1 // loop_header_branch
      %21 = sbr.rel (%p19) target = $region8
    $region5: #{barlow_twins_loss.3} parent=1 // loop_body
      %s23 = ssub.s32 %s18, 1
      %s24 = ssub.s32 %s18, 2
      %s31 = sadd.s32 1, %s26
      %p32 = scmp.ge.s32.totalorder %s31, 1
      %s33 = scalar_select %p32, 0, %s31
      %s34 = sadd.s32 1, %s25
      %s35 = scalar_select %p32, %s34, %s25
      %p36 = scmp.ge.s32.totalorder %s35, 2
      %s37 = scalar_select %p36, 0, %s35
      %s38 = ssub.s32 %s26, %s33
      %s39 = ssub.s32 %s25, %s37
      %s40 = sor.u32 %s38, %s39
      %p41 = scmp.eq.s32.totalorder %s40, 0
      %s43 = sadd.s32 %s42, 1
      %s44 = scalar_select %p41, %s42, %s43
      %p47 = pneg %p41
      %p48 = scmp.eq.s32.totalorder %s18, 1
      %p49 = por %p47, %p48
      %p50 = scmp.ne.s32.totalorder %s42, %s45
      %p51 = scmp.eq.s32.totalorder %s18, 0
      %p52 = por %p50, %p51
      %p53 = scmp.ne.s32.totalorder %s42, %s45
      %p54 = scmp.eq.s32.totalorder %s23, 1
      %p55 = por %p53, %p54
      %p56 = scmp.ne.s32.totalorder %s45, %s46
      %p57 = scmp.eq.s32.totalorder %s23, 0
      %p58 = por %p56, %p57
      %p59 = scmp.ne.s32.totalorder %s45, %s46
      %p60 = scmp.eq.s32.totalorder %s24, 1
      %p61 = por %p59, %p60
      %p63 = scmp.ne.s32.totalorder %s46, %s62
      %p64 = scmp.eq.s32.totalorder %s24, 0
      %p65 = por %p63, %p64
      %s66 = ssub.s32 %s26, %s33
      %s67 = ssub.s32 %s25, %s37
      %s68 = sor.u32 %s66, %s67
      %p69 = scmp.eq.s32.totalorder %s68, 0
      %s71 = sadd.s32 %s70, 1
      %s72 = scalar_select %p69, %s70, %s71
      %p75 = pneg %p69
      %p76 = scmp.eq.s32.totalorder %s18, 1
      %p77 = por %p75, %p76
      %p78 = scmp.ne.s32.totalorder %s70, %s73
      %p79 = scmp.eq.s32.totalorder %s18, 0
      %p80 = por %p78, %p79
      %p81 = scmp.ne.s32.totalorder %s70, %s73
      %p82 = scmp.eq.s32.totalorder %s23, 1
      %p83 = por %p81, %p82
      %p84 = scmp.ne.s32.totalorder %s73, %s74
      %p85 = scmp.eq.s32.totalorder %s23, 0
      %p86 = por %p84, %p85
      %p87 = scmp.ne.s32.totalorder %s73, %s74
      %p88 = scmp.eq.s32.totalorder %s24, 1
      %p89 = por %p87, %p88
      %p91 = scmp.ne.s32.totalorder %s74, %s90
      %p92 = scmp.eq.s32.totalorder %s24, 0
      %p93 = por %p91, %p92
      %s94 = ssub.s32 %s25, %s37
      %p95 = scmp.eq.s32.totalorder %s94, 0
      %s97 = sadd.s32 %s96, 1
      %s98 = scalar_select %p95, %s96, %s97
      %p101 = pneg %p95
      %p102 = scmp.eq.s32.totalorder %s18, 1
      %p103 = por %p101, %p102
      %p104 = scmp.ne.s32.totalorder %s96, %s99
      %p105 = scmp.eq.s32.totalorder %s18, 0
      %p106 = por %p104, %p105
      %p107 = scmp.ne.s32.totalorder %s96, %s99
      %p108 = scmp.eq.s32.totalorder %s23, 1
      %p109 = por %p107, %p108
      %p110 = scmp.ne.s32.totalorder %s99, %s100
      %p111 = scmp.eq.s32.totalorder %s23, 0
      %p112 = por %p110, %p111
      %p113 = scmp.ne.s32.totalorder %s99, %s100
      %p114 = scmp.eq.s32.totalorder %s24, 1
      %p115 = por %p113, %p114
      %p117 = scmp.ne.s32.totalorder %s100, %s116
      %p118 = scmp.eq.s32.totalorder %s24, 0
      %p119 = por %p117, %p118
      %s120 = ssub.s32 %s25, %s37
      %p121 = scmp.eq.s32.totalorder %s120, 0
      %s123 = sadd.s32 %s122, 1
      %s124 = scalar_select %p121, %s122, %s123
      %p127 = pneg %p121
      %p128 = scmp.eq.s32.totalorder %s18, 1
      %p129 = por %p127, %p128
      %p130 = scmp.ne.s32.totalorder %s122, %s125
      %p131 = scmp.eq.s32.totalorder %s18, 0
      %p132 = por %p130, %p131
      %p133 = scmp.ne.s32.totalorder %s122, %s125
      %p134 = scmp.eq.s32.totalorder %s23, 1
      %p135 = por %p133, %p134
      %p136 = scmp.ne.s32.totalorder %s125, %s126
      %p137 = scmp.eq.s32.totalorder %s23, 0
      %p138 = por %p136, %p137
      %p139 = scmp.ne.s32.totalorder %s125, %s126
      %p140 = scmp.eq.s32.totalorder %s24, 1
      %p141 = por %p139, %p140
      %p143 = scmp.ne.s32.totalorder %s126, %s142
      %p144 = scmp.eq.s32.totalorder %s24, 0
      %p145 = por %p143, %p144
      %s146 = ssub.s32 %s25, %s37
      %p147 = scmp.eq.s32.totalorder %s146, 0
      %s149 = sadd.s32 %s148, 1
      %s150 = scalar_select %p147, %s148, %s149
      %p153 = pneg %p147
      %p154 = scmp.eq.s32.totalorder %s18, 1
      %p155 = por %p153, %p154
      %p156 = scmp.ne.s32.totalorder %s148, %s151
      %p157 = scmp.eq.s32.totalorder %s18, 0
      %p158 = por %p156, %p157
      %p159 = scmp.ne.s32.totalorder %s148, %s151
      %p160 = scmp.eq.s32.totalorder %s23, 1
      %p161 = por %p159, %p160
      %p162 = scmp.ne.s32.totalorder %s151, %s152
      %p163 = scmp.eq.s32.totalorder %s23, 0
      %p164 = por %p162, %p163
      %p165 = scmp.ne.s32.totalorder %s151, %s152
      %p166 = scmp.eq.s32.totalorder %s24, 1
      %p167 = por %p165, %p166
      %p169 = scmp.ne.s32.totalorder %s152, %s168
      %p170 = scmp.eq.s32.totalorder %s24, 0
      %p171 = por %p169, %p170
      %s172 = ssub.s32 %s25, %s37
      %p173 = scmp.eq.s32.totalorder %s172, 0
      %s175 = sadd.s32 %s174, 1
      %s176 = scalar_select %p173, %s174, %s175
      %p179 = pneg %p173
      %p180 = scmp.eq.s32.totalorder %s18, 1
      %p181 = por %p179, %p180
      %p182 = scmp.ne.s32.totalorder %s174, %s177
      %p183 = scmp.eq.s32.totalorder %s18, 0
      %p184 = por %p182, %p183
      %p185 = scmp.ne.s32.totalorder %s174, %s177
      %p186 = scmp.eq.s32.totalorder %s23, 1
      %p187 = por %p185, %p186
      %p188 = scmp.ne.s32.totalorder %s177, %s178
      %p189 = scmp.eq.s32.totalorder %s23, 0
      %p190 = por %p188, %p189
      %p191 = scmp.ne.s32.totalorder %s177, %s178
      %p192 = scmp.eq.s32.totalorder %s24, 1
      %p193 = por %p191, %p192
      %p195 = scmp.ne.s32.totalorder %s178, %s194
      %p196 = scmp.eq.s32.totalorder %s24, 0
      %p197 = por %p195, %p196
      %p198 = scmp.le.s32.totalorder 1, %s18
      %p199 = scmp.lt.s32.totalorder %s18, 3
      %p200 = pnand %p198, %p199
      %p201 = pneg %p200
      // Predicated region
      $region9: #{barlow_twins_loss.3} parent=5 // pred_check
        _
      $region10: #{barlow_twins_loss.3} parent=5 // pred_check_branch
        %203 = sbr.rel (%p200) target = $region12
      $region11: #{barlow_twins_loss.3} parent=5 // pred_region
        %s204 = ssub.s32 %s18, 1
      $region12: #{barlow_twins_loss.3} parent=5 // pred_fallthru
        _
      %p205 = scmp.lt.s32.totalorder %s18, 2
      // Predicated region
      $region13: #{barlow_twins_loss.3} parent=5 // pred_check
        %p206 = pneg %p205
      $region14: #{barlow_twins_loss.3} parent=5 // pred_check_branch
        %208 = sbr.rel (%p206) target = $region16
      $region15: #{barlow_twins_loss.3} parent=5 // pred_region
        // Predicated region
        $region17: #{barlow_twins_loss.3} parent=15 // pred_check
          %p209 = pneg %p52
        $region18: #{barlow_twins_loss.3} parent=15 // pred_check_branch
          %211 = sbr.rel (%p209) target = $region20
        $region19: #{barlow_twins_loss.3} parent=15 // pred_region
          %s212 = sand.u32 %s42, 1
          %s213 = scalar_lea.sflag [#allocation3], %s212
          %s214 = sand.u32 %s42, 1
          %s215 = smul.addr %s214, 16
          %s216 = scalar_lea.vmem [#allocation2], %s215
          %s217 = smul.u32 2, %s26
          %s219 = ssub.s32 256, 256
          %220 = vsyncadd %s213, %s219
          %s221 = smul.addr %s217, 2
          %s222 = sadd.s32 %s25, %s221
          %s223 = smul.addr %s222, 128
          %s224 = scalar_lea.hbm %s0, %s223
          %s225 = sshll.u32 %s216, 4
          %s226 = int_to_ptr.vmem [resolvable:$true] %s225
          %231 = dma.hbm_to_vmem [thread:$0]  %s224, 256, %s226, %s213, 256, 128, 8
        $region20: #{barlow_twins_loss.3} parent=15 // pred_fallthru
          _
        // Predicated region
        $region21: #{barlow_twins_loss.3} parent=15 // pred_check
          %p232 = pneg %p80
        $region22: #{barlow_twins_loss.3} parent=15 // pred_check_branch
          %234 = sbr.rel (%p232) target = $region24
        $region23: #{barlow_twins_loss.3} parent=15 // pred_region
          %s235 = sand.u32 %s70, 1
          %s236 = scalar_lea.sflag [#allocation5], %s235
          %s237 = sand.u32 %s70, 1
          %s238 = smul.addr %s237, 16
          %s239 = scalar_lea.vmem [#allocation4], %s238
          %s240 = smul.u32 2, %s26
          %s242 = ssub.s32 256, 256
          %243 = vsyncadd %s236, %s242
          %s244 = smul.addr %s240, 2
          %s245 = sadd.s32 %s25, %s244
          %s246 = smul.addr %s245, 128
          %s247 = scalar_lea.hbm %s1, %s246
          %s248 = sshll.u32 %s239, 4
          %s249 = int_to_ptr.vmem [resolvable:$true] %s248
          %254 = dma.hbm_to_vmem [thread:$0]  %s247, 256, %s249, %s236, 256, 128, 8
        $region24: #{barlow_twins_loss.3} parent=15 // pred_fallthru
          _
      $region16: #{barlow_twins_loss.3} parent=5 // pred_fallthru
        _
      %p255 = scmp.le.s32.totalorder 1, %s18
      %p256 = scmp.lt.s32.totalorder %s18, 3
      %p257 = pnand %p255, %p256
      %p258 = pneg %p257
      // Predicated region
      $region25: #{barlow_twins_loss.3} parent=5 // pred_check
        _
      $region26: #{barlow_twins_loss.3} parent=5 // pred_check_branch
        %260 = sbr.rel (%p257) target = $region28
      $region27: #{barlow_twins_loss.3} parent=5 // pred_region
        %s261 = ssub.s32 %s18, 1
        %s262 = sand.u32 %s45, 1
        %s263 = scalar_lea.sflag [#allocation3], %s262
        %s264 = sand.u32 %s45, 1
        %s265 = smul.addr %s264, 16
        %s266 = scalar_lea.vmem [#allocation2], %s265
        // Predicated region
        $region29: #{barlow_twins_loss.3} parent=27 // pred_check
          %p267 = pneg %p58
        $region30: #{barlow_twins_loss.3} parent=27 // pred_check_branch
          %269 = sbr.rel (%p267) target = $region32
        $region31: #{barlow_twins_loss.3} parent=27 // pred_region
          %270 = dma.done %s263, 256
        $region32: #{barlow_twins_loss.3} parent=27 // pred_fallthru
          _
        %s271 = sand.u32 %s73, 1
        %s272 = scalar_lea.sflag [#allocation5], %s271
        %s273 = sand.u32 %s73, 1
        %s274 = smul.addr %s273, 16
        %s275 = scalar_lea.vmem [#allocation4], %s274
        // Predicated region
        $region33: #{barlow_twins_loss.3} parent=27 // pred_check
          %p276 = pneg %p86
        $region34: #{barlow_twins_loss.3} parent=27 // pred_check_branch
          %278 = sbr.rel (%p276) target = $region36
        $region35: #{barlow_twins_loss.3} parent=27 // pred_region
          %279 = dma.done %s272, 256
        $region36: #{barlow_twins_loss.3} parent=27 // pred_fallthru
          _
        %s280 = sand.u32 %s45, 1
        %s281 = scalar_lea.sflag [#allocation3], %s280
        %s282 = sand.u32 %s45, 1
        %s283 = smul.addr %s282, 16
        %s284 = scalar_lea.vmem [#allocation2], %s283
        %p285 = pneg %p58
        %p286 = pneg %p55
        %s287 = sand.u32 %s73, 1
        %s288 = scalar_lea.sflag [#allocation5], %s287
        %s289 = sand.u32 %s73, 1
        %s290 = smul.addr %s289, 16
        %s291 = scalar_lea.vmem [#allocation4], %s290
        %p292 = pneg %p86
        %p293 = pneg %p83
        %p294 = pneg %p112
        %p295 = pneg %p109
        %p296 = scmp.lt.s32.totalorder %s27, 1
        %s297 = scalar_select %p296, %s27, 1
        %s298 = scalar_lea.vmem %s2, %s297
        %p299 = pneg %p138
        %p300 = pneg %p135
        %p301 = scmp.lt.s32.totalorder %s27, 1
        %s302 = scalar_select %p301, %s27, 1
        %s303 = scalar_lea.vmem %s3, %s302
        %p304 = pneg %p164
        %p305 = pneg %p161
        %p306 = scmp.lt.s32.totalorder %s27, 1
        %s307 = scalar_select %p306, %s27, 1
        %s308 = scalar_lea.vmem %s4, %s307
        %p309 = pneg %p190
        %p310 = pneg %p187
        %p311 = scmp.lt.s32.totalorder %s27, 1
        %s312 = scalar_select %p311, %s27, 1
        %s313 = scalar_lea.vmem %s5, %s312
        %s314 = smul.u32 2, %s28
        %s315 = smul.u32 2, %s28
        %p316 = scmp.lt.s32.totalorder %s27, 1
        %s317 = scalar_select %p316, %s27, 1
        %s318 = scalar_lea.vmem %s2, %s317
        %p319 = scmp.lt.s32.totalorder %s27, 1
        %s320 = scalar_select %p319, %s27, 1
        %s321 = scalar_lea.vmem %s3, %s320
        %p322 = scmp.lt.s32.totalorder %s27, 1
        %s323 = scalar_select %p322, %s27, 1
        %s324 = scalar_lea.vmem %s4, %s323
        %p325 = scmp.lt.s32.totalorder %s27, 1
        %s326 = scalar_select %p325, %s27, 1
        %s327 = scalar_lea.vmem %s5, %s326
        %p328 = scmp.eq.s32.totalorder %s28, 0
        // Predicated region
        $region37: #{barlow_twins_loss.3} parent=27 // pred_check
          %p329 = pneg %p328
        $region38: #{barlow_twins_loss.3} parent=27 // pred_check_branch
          %331 = sbr.rel (%p329) target = $region40
        $region39: #{barlow_twins_loss.3} parent=27 // pred_region
          %332 = vst [vmem:[%s318] sm:$0x1] 0.0
          %333 = vst [vmem:[%s321] sm:$0x1] 0.0
          %334 = vst [vmem:[%s324] sm:$0x1] 0.0
          %335 = vst [vmem:[%s327] sm:$0x1] 0.0
        $region40: #{barlow_twins_loss.3} parent=27 // pred_fallthru
          _
        %v336 = vld [vmem:[%s266] sm:$0xff]
        %v337 = vld [vmem:[%s266 + $0x8] sm:$0xff]
        %v338 = vld [vmem:[%s275] sm:$0xff]
        %v339 = vld [vmem:[%s275 + $0x8] sm:$0xff]
        %v340 = vld [vmem:[%s318] sm:$0x1]
        %v341 = vadd.f32 %v336, %v337
        %v342 = vrot.slane %v341, 4
        %v343 = vadd.f32 %v341, %v342
        %v344 = vrot.slane %v343, 2
        %v345 = vadd.f32 %v343, %v344
        %v346 = vrot.slane %v345, 1
        %v347 = vadd.f32 %v345, %v346
        %v348 = vadd.f32 %v340, %v347
        %349 = vst [vmem:[%s318] sm:$0x1] %v348
        %v350 = vld [vmem:[%s321] sm:$0x1]
        %v351 = vmul.f32 %v336, %v336
        %v352 = vmul.f32 %v337, %v337
        %v353 = vadd.f32 %v351, %v352
        %v354 = vrot.slane %v353, 4
        %v355 = vadd.f32 %v353, %v354
        %v356 = vrot.slane %v355, 2
        %v357 = vadd.f32 %v355, %v356
        %v358 = vrot.slane %v357, 1
        %v359 = vadd.f32 %v357, %v358
        %v360 = vadd.f32 %v350, %v359
        %361 = vst [vmem:[%s321] sm:$0x1] %v360
        %v362 = vld [vmem:[%s324] sm:$0x1]
        %v363 = vadd.f32 %v338, %v339
        %v364 = vrot.slane %v363, 4
        %v365 = vadd.f32 %v363, %v364
        %v366 = vrot.slane %v365, 2
        %v367 = vadd.f32 %v365, %v366
        %v368 = vrot.slane %v367, 1
        %v369 = vadd.f32 %v367, %v368
        %v370 = vadd.f32 %v362, %v369
        %371 = vst [vmem:[%s324] sm:$0x1] %v370
        %v372 = vld [vmem:[%s327] sm:$0x1]
        %v373 = vmul.f32 %v338, %v338
        %v374 = vmul.f32 %v339, %v339
        %v375 = vadd.f32 %v373, %v374
        %v376 = vrot.slane %v375, 4
        %v377 = vadd.f32 %v375, %v376
        %v378 = vrot.slane %v377, 2
        %v379 = vadd.f32 %v377, %v378
        %v380 = vrot.slane %v379, 1
        %v381 = vadd.f32 %v379, %v380
        %v382 = vadd.f32 %v372, %v381
        %383 = vst [vmem:[%s327] sm:$0x1] %v382
        %p384 = scmp.lt.s32.totalorder %s27, 1
        %s385 = scalar_select %p384, %s27, 1
        %s386 = scalar_lea.vmem %s2, %s385
        %p387 = scmp.lt.s32.totalorder %s27, 1
        %s388 = scalar_select %p387, %s27, 1
        %s389 = scalar_lea.vmem %s3, %s388
        %p390 = scmp.lt.s32.totalorder %s27, 1
        %s391 = scalar_select %p390, %s27, 1
        %s392 = scalar_lea.vmem %s4, %s391
        %p393 = scmp.lt.s32.totalorder %s27, 1
        %s394 = scalar_select %p393, %s27, 1
        %s395 = scalar_lea.vmem %s5, %s394
        // Predicated region
        $region41: #{barlow_twins_loss.3} parent=27 // pred_check
          %p396 = pneg %p109
        $region42: #{barlow_twins_loss.3} parent=27 // pred_check_branch
          %398 = sbr.rel (%p396) target = $region44
        $region43: #{barlow_twins_loss.3} parent=27 // pred_region
          _
        $region44: #{barlow_twins_loss.3} parent=27 // pred_fallthru
          _
        // Predicated region
        $region45: #{barlow_twins_loss.3} parent=27 // pred_check
          %p399 = pneg %p135
        $region46: #{barlow_twins_loss.3} parent=27 // pred_check_branch
          %401 = sbr.rel (%p399) target = $region48
        $region47: #{barlow_twins_loss.3} parent=27 // pred_region
          _
        $region48: #{barlow_twins_loss.3} parent=27 // pred_fallthru
          _
        // Predicated region
        $region49: #{barlow_twins_loss.3} parent=27 // pred_check
          %p402 = pneg %p161
        $region50: #{barlow_twins_loss.3} parent=27 // pred_check_branch
          %404 = sbr.rel (%p402) target = $region52
        $region51: #{barlow_twins_loss.3} parent=27 // pred_region
          _
        $region52: #{barlow_twins_loss.3} parent=27 // pred_fallthru
          _
        // Predicated region
        $region53: #{barlow_twins_loss.3} parent=27 // pred_check
          %p405 = pneg %p187
        $region54: #{barlow_twins_loss.3} parent=27 // pred_check_branch
          %407 = sbr.rel (%p405) target = $region56
        $region55: #{barlow_twins_loss.3} parent=27 // pred_region
          _
        $region56: #{barlow_twins_loss.3} parent=27 // pred_fallthru
          _
      $region28: #{barlow_twins_loss.3} parent=5 // pred_fallthru
        _
      %p408 = scmp.le.s32.totalorder 2, %s18
      // Predicated region
      $region57: #{barlow_twins_loss.3} parent=5 // pred_check
        %p409 = pneg %p408
      $region58: #{barlow_twins_loss.3} parent=5 // pred_check_branch
        %411 = sbr.rel (%p409) target = $region60
      $region59: #{barlow_twins_loss.3} parent=5 // pred_region
        %s412 = ssub.s32 %s18, 2
        // Predicated region
        $region61: #{barlow_twins_loss.3} parent=59 // pred_check
          %p413 = pneg %p115
        $region62: #{barlow_twins_loss.3} parent=59 // pred_check_branch
          %415 = sbr.rel (%p413) target = $region64
        $region63: #{barlow_twins_loss.3} parent=59 // pred_region
          %p416 = scmp.lt.s32.totalorder %s29, 1
          %s417 = scalar_select %p416, %s29, 1
          %s418 = scalar_lea.vmem %s2, %s417
        $region64: #{barlow_twins_loss.3} parent=59 // pred_fallthru
          _
        // Predicated region
        $region65: #{barlow_twins_loss.3} parent=59 // pred_check
          %p419 = pneg %p141
        $region66: #{barlow_twins_loss.3} parent=59 // pred_check_branch
          %421 = sbr.rel (%p419) target = $region68
        $region67: #{barlow_twins_loss.3} parent=59 // pred_region
          %p422 = scmp.lt.s32.totalorder %s29, 1
          %s423 = scalar_select %p422, %s29, 1
          %s424 = scalar_lea.vmem %s3, %s423
        $region68: #{barlow_twins_loss.3} parent=59 // pred_fallthru
          _
        // Predicated region
        $region69: #{barlow_twins_loss.3} parent=59 // pred_check
          %p425 = pneg %p167
        $region70: #{barlow_twins_loss.3} parent=59 // pred_check_branch
          %427 = sbr.rel (%p425) target = $region72
        $region71: #{barlow_twins_loss.3} parent=59 // pred_region
          %p428 = scmp.lt.s32.totalorder %s29, 1
          %s429 = scalar_select %p428, %s29, 1
          %s430 = scalar_lea.vmem %s4, %s429
        $region72: #{barlow_twins_loss.3} parent=59 // pred_fallthru
          _
        // Predicated region
        $region73: #{barlow_twins_loss.3} parent=59 // pred_check
          %p431 = pneg %p193
        $region74: #{barlow_twins_loss.3} parent=59 // pred_check_branch
          %433 = sbr.rel (%p431) target = $region76
        $region75: #{barlow_twins_loss.3} parent=59 // pred_region
          %p434 = scmp.lt.s32.totalorder %s29, 1
          %s435 = scalar_select %p434, %s29, 1
          %s436 = scalar_lea.vmem %s5, %s435
        $region76: #{barlow_twins_loss.3} parent=59 // pred_fallthru
          _
      $region60: #{barlow_twins_loss.3} parent=5 // pred_fallthru
        _
    $region6: #{barlow_twins_loss.3} parent=1 // loop_footer
      %s22 = sadd.s32 1, %s18
    $region7: #{barlow_twins_loss.3} parent=1 // loop_footer_branch
      %17 = sbr.rel target = $region3
    $region8: #{barlow_twins_loss.3} parent=1 // loop_exit
      _
    %437 = vsyncpa [#allocation3], 1
    %s438 = scalar_lea.sflag [#allocation3], 1
    %439 = vsyncpa %s438, 1
    %440 = vsyncpa [#allocation5], 1
    %s441 = scalar_lea.sflag [#allocation5], 1
    %442 = vsyncpa %s441, 1

// kernel: barlow_twins_loss.4
$region0: #{barlow_twins_loss.4}
  #allocation0 [shape = 'u32[]', space=smem, size = 0x4, offset = 0x4, fixed_abs, tag = 'smem constant byte address 0x4 - core index']
  #allocation1 [shape = 'u32[144,128]{1,0:T(1,128)}', space=vmem, size = 0x12000, scoped, tag = 'internal scratch']
  %s0 = inlined_call_operand.vmem [shape: f32[16,256], index: 0, kind: input, shape index: {}]
  %s1 = inlined_call_operand.vmem [shape: f32[16,256], index: 1, kind: input, shape index: {}]
  %s2 = inlined_call_operand.vmem [shape: f32[4,256], index: 2, kind: input, shape index: {}]
  %s3 = inlined_call_operand.vmem [shape: bf16[16,256], index: 3, kind: output, shape index: {0}]
  %s4 = inlined_call_operand.vmem [shape: bf16[16,256], index: 4, kind: output, shape index: {1}]
  %s5 = inlined_call_operand.vmem [shape: f32[1,256], index: 5, kind: output, shape index: {2}]
  %6 = xla_tuple %s3, %s4, %s5
  %s7 = sld [smem:[#allocation0]]
  $region215: #{barlow_twins_loss.4} parent=0
    _
  %s9 = ssub.s32 1, %s7
  %s10 = scalar_select 0, %s9, %s7
  $region1: #{barlow_twins_loss.4} parent=0
    #allocation2 [shape = 'u8[16384]{0}', space=vmem, size = 0x4000, scoped, tag = 'input window, operand 0']
    #allocation3 [shape = 'u8[16384]{0}', space=vmem, size = 0x4000, scoped, tag = 'input window, operand 1']
    #allocation4 [shape = 'u8[8192]{0}', space=vmem, size = 0x2000, scoped, tag = 'output window, operand 0']
    #allocation5 [shape = 'u8[8192]{0}', space=vmem, size = 0x2000, scoped, tag = 'output window, operand 1']
    loop: start=0, step=1, limit=4
    $region2: #{barlow_twins_loss.4} parent=1 // loop_pre_header
      _
    $region3: #{barlow_twins_loss.4} parent=1 // loop_header
      %s12 = sphi 0, %s16
      %p13 = scmp.ge.s32.totalorder %s12, 4
      %s19 = sphi 0, %s31
      %s20 = sphi 0, %s27
      %s21 = sphi 0, %s19
      %s22 = sphi 0, %s20
      %s23 = sphi 0, %s21
      %s24 = sphi 0, %s22
      %s36 = sphi 0, %s38
      %s39 = sphi 0, %s36
      %s40 = sphi 0, %s39
      %s56 = sphi 0, %s40
      %s64 = sphi 0, %s66
      %s67 = sphi 0, %s64
      %s68 = sphi 0, %s67
      %s84 = sphi 0, %s68
      %s90 = sphi 0, %s92
      %s93 = sphi 0, %s90
      %s94 = sphi 0, %s93
      %s110 = sphi 0, %s94
      %s118 = sphi 0, %s120
      %s121 = sphi 0, %s118
      %s122 = sphi 0, %s121
      %s138 = sphi 0, %s122
      %s146 = sphi 0, %s148
      %s149 = sphi 0, %s146
      %s150 = sphi 0, %s149
      %s166 = sphi 0, %s150
      %s172 = sphi 0, %s174
      %s175 = sphi 0, %s172
      %s176 = sphi 0, %s175
      %s192 = sphi 0, %s176
    $region4: #{barlow_twins_loss.4} parent=1 // loop_header_branch
      %15 = sbr.rel (%p13) target = $region8
    $region5: #{barlow_twins_loss.4} parent=1 // loop_body
      %s17 = ssub.s32 %s12, 1
      %s18 = ssub.s32 %s12, 2
      %s25 = sadd.s32 1, %s20
      %p26 = scmp.ge.s32.totalorder %s25, 1
      %s27 = scalar_select %p26, 0, %s25
      %s28 = sadd.s32 1, %s19
      %s29 = scalar_select %p26, %s28, %s19
      %p30 = scmp.ge.s32.totalorder %s29, 2
      %s31 = scalar_select %p30, 0, %s29
      %s32 = ssub.s32 %s20, %s27
      %s33 = ssub.s32 %s19, %s31
      %s34 = sor.u32 %s32, %s33
      %p35 = scmp.eq.s32.totalorder %s34, 0
      %s37 = sadd.s32 %s36, 1
      %s38 = scalar_select %p35, %s36, %s37
      %p41 = pneg %p35
      %p42 = scmp.eq.s32.totalorder %s12, 1
      %p43 = por %p41, %p42
      %p44 = scmp.ne.s32.totalorder %s36, %s39
      %p45 = scmp.eq.s32.totalorder %s12, 0
      %p46 = por %p44, %p45
      %p47 = scmp.ne.s32.totalorder %s36, %s39
      %p48 = scmp.eq.s32.totalorder %s17, 1
      %p49 = por %p47, %p48
      %p50 = scmp.ne.s32.totalorder %s39, %s40
      %p51 = scmp.eq.s32.totalorder %s17, 0
      %p52 = por %p50, %p51
      %p53 = scmp.ne.s32.totalorder %s39, %s40
      %p54 = scmp.eq.s32.totalorder %s18, 1
      %p55 = por %p53, %p54
      %p57 = scmp.ne.s32.totalorder %s40, %s56
      %p58 = scmp.eq.s32.totalorder %s18, 0
      %p59 = por %p57, %p58
      %s60 = ssub.s32 %s20, %s27
      %s61 = ssub.s32 %s19, %s31
      %s62 = sor.u32 %s60, %s61
      %p63 = scmp.eq.s32.totalorder %s62, 0
      %s65 = sadd.s32 %s64, 1
      %s66 = scalar_select %p63, %s64, %s65
      %p69 = pneg %p63
      %p70 = scmp.eq.s32.totalorder %s12, 1
      %p71 = por %p69, %p70
      %p72 = scmp.ne.s32.totalorder %s64, %s67
      %p73 = scmp.eq.s32.totalorder %s12, 0
      %p74 = por %p72, %p73
      %p75 = scmp.ne.s32.totalorder %s64, %s67
      %p76 = scmp.eq.s32.totalorder %s17, 1
      %p77 = por %p75, %p76
      %p78 = scmp.ne.s32.totalorder %s67, %s68
      %p79 = scmp.eq.s32.totalorder %s17, 0
      %p80 = por %p78, %p79
      %p81 = scmp.ne.s32.totalorder %s67, %s68
      %p82 = scmp.eq.s32.totalorder %s18, 1
      %p83 = por %p81, %p82
      %p85 = scmp.ne.s32.totalorder %s68, %s84
      %p86 = scmp.eq.s32.totalorder %s18, 0
      %p87 = por %p85, %p86
      %s88 = ssub.s32 %s19, %s31
      %p89 = scmp.eq.s32.totalorder %s88, 0
      %s91 = sadd.s32 %s90, 1
      %s92 = scalar_select %p89, %s90, %s91
      %p95 = pneg %p89
      %p96 = scmp.eq.s32.totalorder %s12, 1
      %p97 = por %p95, %p96
      %p98 = scmp.ne.s32.totalorder %s90, %s93
      %p99 = scmp.eq.s32.totalorder %s12, 0
      %p100 = por %p98, %p99
      %p101 = scmp.ne.s32.totalorder %s90, %s93
      %p102 = scmp.eq.s32.totalorder %s17, 1
      %p103 = por %p101, %p102
      %p104 = scmp.ne.s32.totalorder %s93, %s94
      %p105 = scmp.eq.s32.totalorder %s17, 0
      %p106 = por %p104, %p105
      %p107 = scmp.ne.s32.totalorder %s93, %s94
      %p108 = scmp.eq.s32.totalorder %s18, 1
      %p109 = por %p107, %p108
      %p111 = scmp.ne.s32.totalorder %s94, %s110
      %p112 = scmp.eq.s32.totalorder %s18, 0
      %p113 = por %p111, %p112
      %s114 = ssub.s32 %s20, %s27
      %s115 = ssub.s32 %s19, %s31
      %s116 = sor.u32 %s114, %s115
      %p117 = scmp.eq.s32.totalorder %s116, 0
      %s119 = sadd.s32 %s118, 1
      %s120 = scalar_select %p117, %s118, %s119
      %p123 = pneg %p117
      %p124 = scmp.eq.s32.totalorder %s12, 1
      %p125 = por %p123, %p124
      %p126 = scmp.ne.s32.totalorder %s118, %s121
      %p127 = scmp.eq.s32.totalorder %s12, 0
      %p128 = por %p126, %p127
      %p129 = scmp.ne.s32.totalorder %s118, %s121
      %p130 = scmp.eq.s32.totalorder %s17, 1
      %p131 = por %p129, %p130
      %p132 = scmp.ne.s32.totalorder %s121, %s122
      %p133 = scmp.eq.s32.totalorder %s17, 0
      %p134 = por %p132, %p133
      %p135 = scmp.ne.s32.totalorder %s121, %s122
      %p136 = scmp.eq.s32.totalorder %s18, 1
      %p137 = por %p135, %p136
      %p139 = scmp.ne.s32.totalorder %s122, %s138
      %p140 = scmp.eq.s32.totalorder %s18, 0
      %p141 = por %p139, %p140
      %s142 = ssub.s32 %s20, %s27
      %s143 = ssub.s32 %s19, %s31
      %s144 = sor.u32 %s142, %s143
      %p145 = scmp.eq.s32.totalorder %s144, 0
      %s147 = sadd.s32 %s146, 1
      %s148 = scalar_select %p145, %s146, %s147
      %p151 = pneg %p145
      %p152 = scmp.eq.s32.totalorder %s12, 1
      %p153 = por %p151, %p152
      %p154 = scmp.ne.s32.totalorder %s146, %s149
      %p155 = scmp.eq.s32.totalorder %s12, 0
      %p156 = por %p154, %p155
      %p157 = scmp.ne.s32.totalorder %s146, %s149
      %p158 = scmp.eq.s32.totalorder %s17, 1
      %p159 = por %p157, %p158
      %p160 = scmp.ne.s32.totalorder %s149, %s150
      %p161 = scmp.eq.s32.totalorder %s17, 0
      %p162 = por %p160, %p161
      %p163 = scmp.ne.s32.totalorder %s149, %s150
      %p164 = scmp.eq.s32.totalorder %s18, 1
      %p165 = por %p163, %p164
      %p167 = scmp.ne.s32.totalorder %s150, %s166
      %p168 = scmp.eq.s32.totalorder %s18, 0
      %p169 = por %p167, %p168
      %s170 = ssub.s32 %s19, %s31
      %p171 = scmp.eq.s32.totalorder %s170, 0
      %s173 = sadd.s32 %s172, 1
      %s174 = scalar_select %p171, %s172, %s173
      %p177 = pneg %p171
      %p178 = scmp.eq.s32.totalorder %s12, 1
      %p179 = por %p177, %p178
      %p180 = scmp.ne.s32.totalorder %s172, %s175
      %p181 = scmp.eq.s32.totalorder %s12, 0
      %p182 = por %p180, %p181
      %p183 = scmp.ne.s32.totalorder %s172, %s175
      %p184 = scmp.eq.s32.totalorder %s17, 1
      %p185 = por %p183, %p184
      %p186 = scmp.ne.s32.totalorder %s175, %s176
      %p187 = scmp.eq.s32.totalorder %s17, 0
      %p188 = por %p186, %p187
      %p189 = scmp.ne.s32.totalorder %s175, %s176
      %p190 = scmp.eq.s32.totalorder %s18, 1
      %p191 = por %p189, %p190
      %p193 = scmp.ne.s32.totalorder %s176, %s192
      %p194 = scmp.eq.s32.totalorder %s18, 0
      %p195 = por %p193, %p194
      %p196 = scmp.le.s32.totalorder 1, %s12
      %p197 = scmp.lt.s32.totalorder %s12, 3
      %p198 = pnand %p196, %p197
      %p199 = pneg %p198
      // Predicated region
      $region9: #{barlow_twins_loss.4} parent=5 // pred_check
        _
      $region10: #{barlow_twins_loss.4} parent=5 // pred_check_branch
        %201 = sbr.rel (%p198) target = $region12
      $region11: #{barlow_twins_loss.4} parent=5 // pred_region
        %s202 = ssub.s32 %s12, 1
      $region12: #{barlow_twins_loss.4} parent=5 // pred_fallthru
        _
      %p203 = scmp.lt.s32.totalorder %s12, 2
      // Predicated region
      $region13: #{barlow_twins_loss.4} parent=5 // pred_check
        %p204 = pneg %p203
      $region14: #{barlow_twins_loss.4} parent=5 // pred_check_branch
        %206 = sbr.rel (%p204) target = $region16
      $region15: #{barlow_twins_loss.4} parent=5 // pred_region
        // Predicated region
        $region17: #{barlow_twins_loss.4} parent=15 // pred_check
          %p207 = pneg %p46
        $region18: #{barlow_twins_loss.4} parent=15 // pred_check_branch
          %209 = sbr.rel (%p207) target = $region20
        $region19: #{barlow_twins_loss.4} parent=15 // pred_region
          %s210 = sand.u32 %s36, 1
          %s211 = sand.u32 %s36, 1
          %s212 = smul.addr %s211, 16
          %s213 = scalar_lea.vmem [#allocation2], %s212
          %s214 = smul.u32 2, %s20
          %s215 = smul.addr %s214, 2
          %s216 = sadd.s32 %s19, %s215
          %s217 = smul.addr %s216, 8
          %s218 = scalar_lea.vmem %s0, %s217
          // Predicated region
          $region21: #{barlow_twins_loss.4} parent=19 // pred_check
            _
          $region22: #{barlow_twins_loss.4} parent=19 // pred_check_branch
            %220 = sbr.rel (0) target = $region24
          $region23: #{barlow_twins_loss.4} parent=19 // pred_region
            // Predicated region
            $region25: #{barlow_twins_loss.4} parent=23 // pred_check
              _
            $region26: #{barlow_twins_loss.4} parent=23 // pred_check_branch
              %222 = sbr.rel (0) target = $region28
            $region27: #{barlow_twins_loss.4} parent=23 // pred_region
              // Predicated region
              $region40: #{barlow_twins_loss.4} parent=27 // pred_check
                _
              $region41: #{barlow_twins_loss.4} parent=27 // pred_check_branch
                %239 = sbr.rel (0) target = $region43
              $region42: #{barlow_twins_loss.4} parent=27 // pred_region
                loop: start=0, step=1, limit=1
                $region44: #{barlow_twins_loss.4} parent=42 // loop_pre_header
                  _
                $region45: #{barlow_twins_loss.4} parent=42 // loop_header
                  %s241 = sphi 0, %s245
                  %p242 = scmp.ge.s32.totalorder %s241, 1
                  %s246 = sphi %s218, %s218
                  %s247 = sphi %s213, %s213
                $region46: #{barlow_twins_loss.4} parent=42 // loop_header_branch
                  %244 = sbr.rel (%p242) target = $region50
                $region47: #{barlow_twins_loss.4} parent=42 // loop_body
                  %v248 = vld [vmem:[%s246] sm:$0xff]
                  %249 = vst [vmem:[%s247] sm:$0xff] %v248
                  %v250 = vld [vmem:[%s246 + $0x10] sm:$0xff]
                  %251 = vst [vmem:[%s247 + $0x8] sm:$0xff] %v250
                $region48: #{barlow_twins_loss.4} parent=42 // loop_footer
                  %s245 = sadd.s32 1, %s241
                $region49: #{barlow_twins_loss.4} parent=42 // loop_footer_branch
                  %240 = sbr.rel target = $region45
                $region50: #{barlow_twins_loss.4} parent=42 // loop_exit
                  _
              $region43: #{barlow_twins_loss.4} parent=27 // pred_fallthru
                _
              // Predicated region
              $region51: #{barlow_twins_loss.4} parent=27 // pred_check
                _
              $region52: #{barlow_twins_loss.4} parent=27 // pred_check_branch
                %253 = sbr.rel target = $region54
              $region53: #{barlow_twins_loss.4} parent=27 // pred_region
                _
              $region54: #{barlow_twins_loss.4} parent=27 // pred_fallthru
                _
            $region28: #{barlow_twins_loss.4} parent=23 // pred_fallthru
              _
            // Predicated region
            $region29: #{barlow_twins_loss.4} parent=23 // pred_check
              _
            $region30: #{barlow_twins_loss.4} parent=23 // pred_check_branch
              %224 = sbr.rel target = $region32
            $region31: #{barlow_twins_loss.4} parent=23 // pred_region
              loop: start=0, step=1, limit=1
              $region33: #{barlow_twins_loss.4} parent=31 // loop_pre_header
                _
              $region34: #{barlow_twins_loss.4} parent=31 // loop_header
                %s227 = sphi 0, %s231
                %p228 = scmp.ge.s32.totalorder %s227, 1
                %s232 = sphi %s218, %s218
                %s233 = sphi %s213, %s213
              $region35: #{barlow_twins_loss.4} parent=31 // loop_header_branch
                %230 = sbr.rel (%p228) target = $region39
              $region36: #{barlow_twins_loss.4} parent=31 // loop_body
                %v234 = vld [vmem:[%s232] sm:$0xff]
                %235 = vst [vmem:[%s233] sm:$0xff] %v234
                %v236 = vld [vmem:[%s232 + $0x10] sm:$0xff]
                %237 = vst [vmem:[%s233 + $0x8] sm:$0xff] %v236
              $region37: #{barlow_twins_loss.4} parent=31 // loop_footer
                %s231 = sadd.s32 1, %s227
              $region38: #{barlow_twins_loss.4} parent=31 // loop_footer_branch
                %226 = sbr.rel target = $region34
              $region39: #{barlow_twins_loss.4} parent=31 // loop_exit
                _
            $region32: #{barlow_twins_loss.4} parent=23 // pred_fallthru
              _
          $region24: #{barlow_twins_loss.4} parent=19 // pred_fallthru
            _
          %254 = vnop
        $region20: #{barlow_twins_loss.4} parent=15 // pred_fallthru
          _
        // Predicated region
        $region55: #{barlow_twins_loss.4} parent=15 // pred_check
          %p255 = pneg %p74
        $region56: #{barlow_twins_loss.4} parent=15 // pred_check_branch
          %257 = sbr.rel (%p255) target = $region58
        $region57: #{barlow_twins_loss.4} parent=15 // pred_region
          %s258 = sand.u32 %s64, 1
          %s259 = sand.u32 %s64, 1
          %s260 = smul.addr %s259, 16
          %s261 = scalar_lea.vmem [#allocation3], %s260
          %s262 = smul.u32 2, %s20
          %s263 = smul.addr %s262, 2
          %s264 = sadd.s32 %s19, %s263
          %s265 = smul.addr %s264, 8
          %s266 = scalar_lea.vmem %s1, %s265
          // Predicated region
          $region59: #{barlow_twins_loss.4} parent=57 // pred_check
            _
          $region60: #{barlow_twins_loss.4} parent=57 // pred_check_branch
            %268 = sbr.rel (0) target = $region62
          $region61: #{barlow_twins_loss.4} parent=57 // pred_region
            // Predicated region
            $region63: #{barlow_twins_loss.4} parent=61 // pred_check
              _
            $region64: #{barlow_twins_loss.4} parent=61 // pred_check_branch
              %270 = sbr.rel (0) target = $region66
            $region65: #{barlow_twins_loss.4} parent=61 // pred_region
              // Predicated region
              $region78: #{barlow_twins_loss.4} parent=65 // pred_check
                _
              $region79: #{barlow_twins_loss.4} parent=65 // pred_check_branch
                %287 = sbr.rel (0) target = $region81
              $region80: #{barlow_twins_loss.4} parent=65 // pred_region
                loop: start=0, step=1, limit=1
                $region82: #{barlow_twins_loss.4} parent=80 // loop_pre_header
                  _
                $region83: #{barlow_twins_loss.4} parent=80 // loop_header
                  %s289 = sphi 0, %s293
                  %p290 = scmp.ge.s32.totalorder %s289, 1
                  %s294 = sphi %s266, %s266
                  %s295 = sphi %s261, %s261
                $region84: #{barlow_twins_loss.4} parent=80 // loop_header_branch
                  %292 = sbr.rel (%p290) target = $region88
                $region85: #{barlow_twins_loss.4} parent=80 // loop_body
                  %v296 = vld [vmem:[%s294] sm:$0xff]
                  %297 = vst [vmem:[%s295] sm:$0xff] %v296
                  %v298 = vld [vmem:[%s294 + $0x10] sm:$0xff]
                  %299 = vst [vmem:[%s295 + $0x8] sm:$0xff] %v298
                $region86: #{barlow_twins_loss.4} parent=80 // loop_footer
                  %s293 = sadd.s32 1, %s289
                $region87: #{barlow_twins_loss.4} parent=80 // loop_footer_branch
                  %288 = sbr.rel target = $region83
                $region88: #{barlow_twins_loss.4} parent=80 // loop_exit
                  _
              $region81: #{barlow_twins_loss.4} parent=65 // pred_fallthru
                _
              // Predicated region
              $region89: #{barlow_twins_loss.4} parent=65 // pred_check
                _
              $region90: #{barlow_twins_loss.4} parent=65 // pred_check_branch
                %301 = sbr.rel target = $region92
              $region91: #{barlow_twins_loss.4} parent=65 // pred_region
                _
              $region92: #{barlow_twins_loss.4} parent=65 // pred_fallthru
                _
            $region66: #{barlow_twins_loss.4} parent=61 // pred_fallthru
              _
            // Predicated region
            $region67: #{barlow_twins_loss.4} parent=61 // pred_check
              _
            $region68: #{barlow_twins_loss.4} parent=61 // pred_check_branch
              %272 = sbr.rel target = $region70
            $region69: #{barlow_twins_loss.4} parent=61 // pred_region
              loop: start=0, step=1, limit=1
              $region71: #{barlow_twins_loss.4} parent=69 // loop_pre_header
                _
              $region72: #{barlow_twins_loss.4} parent=69 // loop_header
                %s275 = sphi 0, %s279
                %p276 = scmp.ge.s32.totalorder %s275, 1
                %s280 = sphi %s266, %s266
                %s281 = sphi %s261, %s261
              $region73: #{barlow_twins_loss.4} parent=69 // loop_header_branch
                %278 = sbr.rel (%p276) target = $region77
              $region74: #{barlow_twins_loss.4} parent=69 // loop_body
                %v282 = vld [vmem:[%s280] sm:$0xff]
                %283 = vst [vmem:[%s281] sm:$0xff] %v282
                %v284 = vld [vmem:[%s280 + $0x10] sm:$0xff]
                %285 = vst [vmem:[%s281 + $0x8] sm:$0xff] %v284
              $region75: #{barlow_twins_loss.4} parent=69 // loop_footer
                %s279 = sadd.s32 1, %s275
              $region76: #{barlow_twins_loss.4} parent=69 // loop_footer_branch
                %274 = sbr.rel target = $region72
              $region77: #{barlow_twins_loss.4} parent=69 // loop_exit
                _
            $region70: #{barlow_twins_loss.4} parent=61 // pred_fallthru
              _
          $region62: #{barlow_twins_loss.4} parent=57 // pred_fallthru
            _
          %302 = vnop
        $region58: #{barlow_twins_loss.4} parent=15 // pred_fallthru
          _
        // Predicated region
        $region93: #{barlow_twins_loss.4} parent=15 // pred_check
          %p303 = pneg %p100
        $region94: #{barlow_twins_loss.4} parent=15 // pred_check_branch
          %305 = sbr.rel (%p303) target = $region96
        $region95: #{barlow_twins_loss.4} parent=15 // pred_region
          %p306 = scmp.lt.s32.totalorder %s19, 1
          %s307 = scalar_select %p306, %s19, 1
          %s308 = smul.addr %s307, 4
          %s309 = scalar_lea.vmem %s2, %s308
        $region96: #{barlow_twins_loss.4} parent=15 // pred_fallthru
          _
      $region16: #{barlow_twins_loss.4} parent=5 // pred_fallthru
        _
      %p310 = scmp.le.s32.totalorder 1, %s12
      %p311 = scmp.lt.s32.totalorder %s12, 3
      %p312 = pnand %p310, %p311
      %p313 = pneg %p312
      // Predicated region
      $region97: #{barlow_twins_loss.4} parent=5 // pred_check
        _
      $region98: #{barlow_twins_loss.4} parent=5 // pred_check_branch
        %315 = sbr.rel (%p312) target = $region100
      $region99: #{barlow_twins_loss.4} parent=5 // pred_region
        %s316 = ssub.s32 %s12, 1
        %s317 = sand.u32 %s39, 1
        %s318 = sand.u32 %s39, 1
        %s319 = smul.addr %s318, 16
        %s320 = scalar_lea.vmem [#allocation2], %s319
        // Predicated region
        $region101: #{barlow_twins_loss.4} parent=99 // pred_check
          %p321 = pneg %p52
        $region102: #{barlow_twins_loss.4} parent=99 // pred_check_branch
          %323 = sbr.rel (%p321) target = $region104
        $region103: #{barlow_twins_loss.4} parent=99 // pred_region
          _
        $region104: #{barlow_twins_loss.4} parent=99 // pred_fallthru
          _
        %s324 = sand.u32 %s67, 1
        %s325 = sand.u32 %s67, 1
        %s326 = smul.addr %s325, 16
        %s327 = scalar_lea.vmem [#allocation3], %s326
        // Predicated region
        $region105: #{barlow_twins_loss.4} parent=99 // pred_check
          %p328 = pneg %p80
        $region106: #{barlow_twins_loss.4} parent=99 // pred_check_branch
          %330 = sbr.rel (%p328) target = $region108
        $region107: #{barlow_twins_loss.4} parent=99 // pred_region
          _
        $region108: #{barlow_twins_loss.4} parent=99 // pred_fallthru
          _
        %s331 = sand.u32 %s39, 1
        %s332 = sand.u32 %s39, 1
        %s333 = smul.addr %s332, 16
        %s334 = scalar_lea.vmem [#allocation2], %s333
        %p335 = pneg %p52
        %p336 = pneg %p49
        %s337 = sand.u32 %s67, 1
        %s338 = sand.u32 %s67, 1
        %s339 = smul.addr %s338, 16
        %s340 = scalar_lea.vmem [#allocation3], %s339
        %p341 = pneg %p80
        %p342 = pneg %p77
        %p343 = scmp.lt.s32.totalorder %s21, 1
        %s344 = scalar_select %p343, %s21, 1
        %s345 = smul.addr %s344, 4
        %s346 = scalar_lea.vmem %s2, %s345
        %p347 = pneg %p106
        %p348 = pneg %p103
        %p349 = pneg %p134
        %p350 = pneg %p131
        %s351 = sand.u32 %s121, 1
        %s352 = sand.u32 %s121, 1
        %s353 = smul.addr %s352, 8
        %s354 = scalar_lea.vmem [#allocation4], %s353
        %p355 = pneg %p162
        %p356 = pneg %p159
        %s357 = sand.u32 %s149, 1
        %s358 = sand.u32 %s149, 1
        %s359 = smul.addr %s358, 8
        %s360 = scalar_lea.vmem [#allocation5], %s359
        %p361 = pneg %p188
        %p362 = pneg %p185
        %p363 = scmp.lt.s32.totalorder %s21, 1
        %s364 = scalar_select %p363, %s21, 1
        %s365 = scalar_lea.vmem %s5, %s364
        %s366 = smul.u32 2, %s22
        %s367 = smul.u32 2, %s22
        %p368 = scmp.lt.s32.totalorder %s21, 1
        %s369 = scalar_select %p368, %s21, 1
        %s370 = smul.addr %s369, 4
        %s371 = scalar_lea.vmem %s2, %s370
        %s372 = smul.u32 2, %s22
        %s373 = smul.u32 2, %s22
        %p374 = scmp.lt.s32.totalorder %s21, 1
        %s375 = scalar_select %p374, %s21, 1
        %s376 = scalar_lea.vmem %s5, %s375
        %p377 = scmp.eq.s32.totalorder %s22, 0
        // Predicated region
        $region109: #{barlow_twins_loss.4} parent=99 // pred_check
          %p378 = pneg %p377
        $region110: #{barlow_twins_loss.4} parent=99 // pred_check_branch
          %380 = sbr.rel (%p378) target = $region112
        $region111: #{barlow_twins_loss.4} parent=99 // pred_region
          %381 = vst [vmem:[%s376] sm:$0x1] 0.0
        $region112: #{barlow_twins_loss.4} parent=99 // pred_fallthru
          _
        %v382 = vld [vmem:[%s371] sm:$0xf]
        %v383 = vld [vmem:[%s320] sm:$0xff]
        %v384 = vld [vmem:[%s320 + $0x8] sm:$0xff]
        %v385 = vlaneseq
        %v386 = vshrl.u32 %v385, 7
        %v387 = vsub.s32 0, %v386
        %v388 = vrot.slane %v382, %v387
        %v389 = vmul.f32 %v383, %v388
        %v390 = vmul.f32 %v384, %v388
        %v391 = vlaneseq
        %v392 = vshrl.u32 %v391, 7
        %v393 = vsub.s32 1, %v392
        %v394 = vrot.slane %v382, %v393
        %v395 = vadd.f32 %v389, %v394
        %v396 = vadd.f32 %v390, %v394
        %v397 = vld [vmem:[%s327] sm:$0xff]
        %v398 = vld [vmem:[%s327 + $0x8] sm:$0xff]
        %v399 = vlaneseq
        %v400 = vshrl.u32 %v399, 7
        %v401 = vsub.s32 2, %v400
        %v402 = vrot.slane %v382, %v401
        %v403 = vmul.f32 %v397, %v402
        %v404 = vmul.f32 %v398, %v402
        %v405 = vlaneseq
        %v406 = vshrl.u32 %v405, 7
        %v407 = vsub.s32 3, %v406
        %v408 = vrot.slane %v382, %v407
        %v409 = vadd.f32 %v403, %v408
        %v410 = vadd.f32 %v404, %v408
        %v411 = vpack.c.bf16 %v396, %v395
        %v412 = vpack.c.bf16 %v410, %v409
        %v414 = vunpack.c.l.b16 %v411
        %v415 = vunpack.c.h.b16 %v411
        %v416 = vpack.c.b16 %v414, %v414
        %v417 = vpack.c.b16 %v415, %v415
        %420 = vst [vmem:[%s354] sm:$0xf] %v416
        %421 = vst [vmem:[%s354 + $0x4] sm:$0xf] %v417
        %v423 = vunpack.c.l.b16 %v412
        %v424 = vunpack.c.h.b16 %v412
        %v425 = vpack.c.b16 %v423, %v423
        %v426 = vpack.c.b16 %v424, %v424
        %429 = vst [vmem:[%s360] sm:$0xf] %v425
        %430 = vst [vmem:[%s360 + $0x4] sm:$0xf] %v426
        %v431 = vld [vmem:[%s376] sm:$0x1]
        %v432 = vunpack.c.l.bf16 %v411
        %v433 = vunpack.c.h.bf16 %v411
        %v434 = vunpack.c.l.bf16 %v412
        %v435 = vunpack.c.h.bf16 %v412
        %v436 = vmul.f32 %v432, %v434
        %v437 = vmul.f32 %v433, %v435
        %v438 = vadd.f32 %v436, %v437
        %v439 = vrot.slane %v438, 4
        %v440 = vadd.f32 %v438, %v439
        %v441 = vrot.slane %v440, 2
        %v442 = vadd.f32 %v440, %v441
        %v443 = vrot.slane %v442, 1
        %v444 = vadd.f32 %v442, %v443
        %v445 = vadd.f32 %v431, %v444
        %446 = vst [vmem:[%s376] sm:$0x1] %v445
        %s447 = sand.u32 %s121, 1
        %s448 = sand.u32 %s121, 1
        %s449 = smul.addr %s448, 8
        %s450 = scalar_lea.vmem [#allocation4], %s449
        %s451 = sand.u32 %s149, 1
        %s452 = sand.u32 %s149, 1
        %s453 = smul.addr %s452, 8
        %s454 = scalar_lea.vmem [#allocation5], %s453
        %p455 = scmp.lt.s32.totalorder %s21, 1
        %s456 = scalar_select %p455, %s21, 1
        %s457 = scalar_lea.vmem %s5, %s456
        // Predicated region
        $region113: #{barlow_twins_loss.4} parent=99 // pred_check
          %p458 = pneg %p131
        $region114: #{barlow_twins_loss.4} parent=99 // pred_check_branch
          %460 = sbr.rel (%p458) target = $region116
        $region115: #{barlow_twins_loss.4} parent=99 // pred_region
          %s461 = smul.u32 2, %s22
          %s462 = smul.addr %s461, 2
          %s463 = sadd.s32 %s21, %s462
          %s464 = smul.addr %s463, 4
          %s465 = scalar_lea.vmem %s3, %s464
          // Predicated region
          $region117: #{barlow_twins_loss.4} parent=115 // pred_check
            _
          $region118: #{barlow_twins_loss.4} parent=115 // pred_check_branch
            %467 = sbr.rel (0) target = $region120
          $region119: #{barlow_twins_loss.4} parent=115 // pred_region
            // Predicated region
            $region121: #{barlow_twins_loss.4} parent=119 // pred_check
              _
            $region122: #{barlow_twins_loss.4} parent=119 // pred_check_branch
              %469 = sbr.rel target = $region124
            $region123: #{barlow_twins_loss.4} parent=119 // pred_region
              // Predicated region
              $region136: #{barlow_twins_loss.4} parent=123 // pred_check
                _
              $region137: #{barlow_twins_loss.4} parent=123 // pred_check_branch
                %486 = sbr.rel (0) target = $region139
              $region138: #{barlow_twins_loss.4} parent=123 // pred_region
                loop: start=0, step=1, limit=1
                $region140: #{barlow_twins_loss.4} parent=138 // loop_pre_header
                  _
                $region141: #{barlow_twins_loss.4} parent=138 // loop_header
                  %s488 = sphi 0, %s492
                  %p489 = scmp.ge.s32.totalorder %s488, 1
                  %s493 = sphi %s450, %s450
                  %s494 = sphi %s465, %s465
                $region142: #{barlow_twins_loss.4} parent=138 // loop_header_branch
                  %491 = sbr.rel (%p489) target = $region146
                $region143: #{barlow_twins_loss.4} parent=138 // loop_body
                  _
                $region144: #{barlow_twins_loss.4} parent=138 // loop_footer
                  %s492 = sadd.s32 1, %s488
                $region145: #{barlow_twins_loss.4} parent=138 // loop_footer_branch
                  %487 = sbr.rel target = $region141
                $region146: #{barlow_twins_loss.4} parent=138 // loop_exit
                  _
                loop: start=0, step=1, limit=1
                $region147: #{barlow_twins_loss.4} parent=138 // loop_pre_header
                  _
                $region148: #{barlow_twins_loss.4} parent=138 // loop_header
                  %s497 = sphi 0, %s501
                  %p498 = scmp.ge.s32.totalorder %s497, 1
                  %s502 = sphi %s450, %s450
                  %s503 = sphi %s465, %s465
                $region149: #{barlow_twins_loss.4} parent=138 // loop_header_branch
                  %500 = sbr.rel (%p498) target = $region153
                $region150: #{barlow_twins_loss.4} parent=138 // loop_body
                  %v504 = vld [vmem:[%s502] sm:$0xf]
                  %505 = vst [vmem:[%s503] sm:$0xf] %v504
                  %v506 = vld [vmem:[%s502 + $0x4] sm:$0xf]
                  %507 = vst [vmem:[%s503 + $0x8] sm:$0xf] %v506
                $region151: #{barlow_twins_loss.4} parent=138 // loop_footer
                  %s501 = sadd.s32 1, %s497
                $region152: #{barlow_twins_loss.4} parent=138 // loop_footer_branch
                  %496 = sbr.rel target = $region148
                $region153: #{barlow_twins_loss.4} parent=138 // loop_exit
                  _
              $region139: #{barlow_twins_loss.4} parent=123 // pred_fallthru
                _
            $region124: #{barlow_twins_loss.4} parent=119 // pred_fallthru
              _
            // Predicated region
            $region125: #{barlow_twins_loss.4} parent=119 // pred_check
              _
            $region126: #{barlow_twins_loss.4} parent=119 // pred_check_branch
              %471 = sbr.rel (0) target = $region128
            $region127: #{barlow_twins_loss.4} parent=119 // pred_region
              loop: start=0, step=1, limit=1
              $region129: #{barlow_twins_loss.4} parent=127 // loop_pre_header
                _
              $region130: #{barlow_twins_loss.4} parent=127 // loop_header
                %s474 = sphi 0, %s478
                %p475 = scmp.ge.s32.totalorder %s474, 1
                %s479 = sphi %s450, %s450
                %s480 = sphi %s465, %s465
              $region131: #{barlow_twins_loss.4} parent=127 // loop_header_branch
                %477 = sbr.rel (%p475) target = $region135
              $region132: #{barlow_twins_loss.4} parent=127 // loop_body
                %v481 = vld [vmem:[%s479] sm:$0xf]
                %482 = vst [vmem:[%s480] sm:$0xf] %v481
                %v483 = vld [vmem:[%s479 + $0x4] sm:$0xf]
                %484 = vst [vmem:[%s480 + $0x8] sm:$0xf] %v483
              $region133: #{barlow_twins_loss.4} parent=127 // loop_footer
                %s478 = sadd.s32 1, %s474
              $region134: #{barlow_twins_loss.4} parent=127 // loop_footer_branch
                %473 = sbr.rel target = $region130
              $region135: #{barlow_twins_loss.4} parent=127 // loop_exit
                _
            $region128: #{barlow_twins_loss.4} parent=119 // pred_fallthru
              _
          $region120: #{barlow_twins_loss.4} parent=115 // pred_fallthru
            _
          %508 = vnop
        $region116: #{barlow_twins_loss.4} parent=99 // pred_fallthru
          _
        // Predicated region
        $region154: #{barlow_twins_loss.4} parent=99 // pred_check
          %p509 = pneg %p159
        $region155: #{barlow_twins_loss.4} parent=99 // pred_check_branch
          %511 = sbr.rel (%p509) target = $region157
        $region156: #{barlow_twins_loss.4} parent=99 // pred_region
          %s512 = smul.u32 2, %s22
          %s513 = smul.addr %s512, 2
          %s514 = sadd.s32 %s21, %s513
          %s515 = smul.addr %s514, 4
          %s516 = scalar_lea.vmem %s4, %s515
          // Predicated region
          $region158: #{barlow_twins_loss.4} parent=156 // pred_check
            _
          $region159: #{barlow_twins_loss.4} parent=156 // pred_check_branch
            %518 = sbr.rel (0) target = $region161
          $region160: #{barlow_twins_loss.4} parent=156 // pred_region
            // Predicated region
            $region162: #{barlow_twins_loss.4} parent=160 // pred_check
              _
            $region163: #{barlow_twins_loss.4} parent=160 // pred_check_branch
              %520 = sbr.rel target = $region165
            $region164: #{barlow_twins_loss.4} parent=160 // pred_region
              // Predicated region
              $region177: #{barlow_twins_loss.4} parent=164 // pred_check
                _
              $region178: #{barlow_twins_loss.4} parent=164 // pred_check_branch
                %537 = sbr.rel (0) target = $region180
              $region179: #{barlow_twins_loss.4} parent=164 // pred_region
                loop: start=0, step=1, limit=1
                $region181: #{barlow_twins_loss.4} parent=179 // loop_pre_header
                  _
                $region182: #{barlow_twins_loss.4} parent=179 // loop_header
                  %s539 = sphi 0, %s543
                  %p540 = scmp.ge.s32.totalorder %s539, 1
                  %s544 = sphi %s454, %s454
                  %s545 = sphi %s516, %s516
                $region183: #{barlow_twins_loss.4} parent=179 // loop_header_branch
                  %542 = sbr.rel (%p540) target = $region187
                $region184: #{barlow_twins_loss.4} parent=179 // loop_body
                  _
                $region185: #{barlow_twins_loss.4} parent=179 // loop_footer
                  %s543 = sadd.s32 1, %s539
                $region186: #{barlow_twins_loss.4} parent=179 // loop_footer_branch
                  %538 = sbr.rel target = $region182
                $region187: #{barlow_twins_loss.4} parent=179 // loop_exit
                  _
                loop: start=0, step=1, limit=1
                $region188: #{barlow_twins_loss.4} parent=179 // loop_pre_header
                  _
                $region189: #{barlow_twins_loss.4} parent=179 // loop_header
                  %s548 = sphi 0, %s552
                  %p549 = scmp.ge.s32.totalorder %s548, 1
                  %s553 = sphi %s454, %s454
                  %s554 = sphi %s516, %s516
                $region190: #{barlow_twins_loss.4} parent=179 // loop_header_branch
                  %551 = sbr.rel (%p549) target = $region194
                $region191: #{barlow_twins_loss.4} parent=179 // loop_body
                  %v555 = vld [vmem:[%s553] sm:$0xf]
                  %556 = vst [vmem:[%s554] sm:$0xf] %v555
                  %v557 = vld [vmem:[%s553 + $0x4] sm:$0xf]
                  %558 = vst [vmem:[%s554 + $0x8] sm:$0xf] %v557
                $region192: #{barlow_twins_loss.4} parent=179 // loop_footer
                  %s552 = sadd.s32 1, %s548
                $region193: #{barlow_twins_loss.4} parent=179 // loop_footer_branch
                  %547 = sbr.rel target = $region189
                $region194: #{barlow_twins_loss.4} parent=179 // loop_exit
                  _
              $region180: #{barlow_twins_loss.4} parent=164 // pred_fallthru
                _
            $region165: #{barlow_twins_loss.4} parent=160 // pred_fallthru
              _
            // Predicated region
            $region166: #{barlow_twins_loss.4} parent=160 // pred_check
              _
            $region167: #{barlow_twins_loss.4} parent=160 // pred_check_branch
              %522 = sbr.rel (0) target = $region169
            $region168: #{barlow_twins_loss.4} parent=160 // pred_region
              loop: start=0, step=1, limit=1
              $region170: #{barlow_twins_loss.4} parent=168 // loop_pre_header
                _
              $region171: #{barlow_twins_loss.4} parent=168 // loop_header
                %s525 = sphi 0, %s529
                %p526 = scmp.ge.s32.totalorder %s525, 1
                %s530 = sphi %s454, %s454
                %s531 = sphi %s516, %s516
              $region172: #{barlow_twins_loss.4} parent=168 // loop_header_branch
                %528 = sbr.rel (%p526) target = $region176
              $region173: #{barlow_twins_loss.4} parent=168 // loop_body
                %v532 = vld [vmem:[%s530] sm:$0xf]
                %533 = vst [vmem:[%s531] sm:$0xf] %v532
                %v534 = vld [vmem:[%s530 + $0x4] sm:$0xf]
                %535 = vst [vmem:[%s531 + $0x8] sm:$0xf] %v534
              $region174: #{barlow_twins_loss.4} parent=168 // loop_footer
                %s529 = sadd.s32 1, %s525
              $region175: #{barlow_twins_loss.4} parent=168 // loop_footer_branch
                %524 = sbr.rel target = $region171
              $region176: #{barlow_twins_loss.4} parent=168 // loop_exit
                _
            $region169: #{barlow_twins_loss.4} parent=160 // pred_fallthru
              _
          $region161: #{barlow_twins_loss.4} parent=156 // pred_fallthru
            _
          %559 = vnop
        $region157: #{barlow_twins_loss.4} parent=99 // pred_fallthru
          _
        // Predicated region
        $region195: #{barlow_twins_loss.4} parent=99 // pred_check
          %p560 = pneg %p185
        $region196: #{barlow_twins_loss.4} parent=99 // pred_check_branch
          %562 = sbr.rel (%p560) target = $region198
        $region197: #{barlow_twins_loss.4} parent=99 // pred_region
          _
        $region198: #{barlow_twins_loss.4} parent=99 // pred_fallthru
          _
      $region100: #{barlow_twins_loss.4} parent=5 // pred_fallthru
        _
      %p563 = scmp.le.s32.totalorder 2, %s12
      // Predicated region
      $region199: #{barlow_twins_loss.4} parent=5 // pred_check
        %p564 = pneg %p563
      $region200: #{barlow_twins_loss.4} parent=5 // pred_check_branch
        %566 = sbr.rel (%p564) target = $region202
      $region201: #{barlow_twins_loss.4} parent=5 // pred_region
        %s567 = ssub.s32 %s12, 2
        // Predicated region
        $region203: #{barlow_twins_loss.4} parent=201 // pred_check
          %p568 = pneg %p137
        $region204: #{barlow_twins_loss.4} parent=201 // pred_check_branch
          %570 = sbr.rel (%p568) target = $region206
        $region205: #{barlow_twins_loss.4} parent=201 // pred_region
          %s571 = sand.u32 %s122, 1
          %s572 = sand.u32 %s122, 1
          %s573 = smul.addr %s572, 8
          %s574 = scalar_lea.vmem [#allocation4], %s573
        $region206: #{barlow_twins_loss.4} parent=201 // pred_fallthru
          _
        // Predicated region
        $region207: #{barlow_twins_loss.4} parent=201 // pred_check
          %p575 = pneg %p165
        $region208: #{barlow_twins_loss.4} parent=201 // pred_check_branch
          %577 = sbr.rel (%p575) target = $region210
        $region209: #{barlow_twins_loss.4} parent=201 // pred_region
          %s578 = sand.u32 %s150, 1
          %s579 = sand.u32 %s150, 1
          %s580 = smul.addr %s579, 8
          %s581 = scalar_lea.vmem [#allocation5], %s580
        $region210: #{barlow_twins_loss.4} parent=201 // pred_fallthru
          _
        // Predicated region
        $region211: #{barlow_twins_loss.4} parent=201 // pred_check
          %p582 = pneg %p191
        $region212: #{barlow_twins_loss.4} parent=201 // pred_check_branch
          %584 = sbr.rel (%p582) target = $region214
        $region213: #{barlow_twins_loss.4} parent=201 // pred_region
          %p585 = scmp.lt.s32.totalorder %s23, 1
          %s586 = scalar_select %p585, %s23, 1
          %s587 = scalar_lea.vmem %s5, %s586
        $region214: #{barlow_twins_loss.4} parent=201 // pred_fallthru
          _
      $region202: #{barlow_twins_loss.4} parent=5 // pred_fallthru
        _
    $region6: #{barlow_twins_loss.4} parent=1 // loop_footer
      %s16 = sadd.s32 1, %s12
    $region7: #{barlow_twins_loss.4} parent=1 // loop_footer_branch
      %11 = sbr.rel target = $region3
    $region8: #{barlow_twins_loss.4} parent=1 // loop_exit
      _

// kernel: barlow_twins_loss.5
$region0: #{barlow_twins_loss.5}
  #allocation0 [shape = 'u32[]', space=smem, size = 0x4, offset = 0x4, fixed_abs, tag = 'smem constant byte address 0x4 - core index']
  #allocation1 [shape = 'u32[144,128]{1,0:T(1,128)}', space=vmem, size = 0x12000, scoped, tag = 'internal scratch']
  #allocation2 [shape = 'f32[128,128]{1,0:T(8,128)}', space=vmem, size = 0x10000, scoped, tag = 'scratch operand']
  %s0 = inlined_call_operand.vmem [shape: bf16[16,256], index: 0, kind: input, shape index: {}]
  %s1 = inlined_call_operand.vmem [shape: bf16[16,256], index: 1, kind: input, shape index: {}]
  %s2 = inlined_call_operand.vmem [shape: f32[16,256], index: 2, kind: output, shape index: {}]
  %s3 = sld [smem:[#allocation0]]
  $region138: #{barlow_twins_loss.5} parent=0
    _
  %s5 = ssub.s32 1, %s3
  %s6 = scalar_select 0, %s5, %s3
  $region1: #{barlow_twins_loss.5} parent=0
    #allocation3 [shape = 'u8[8192]{0}', space=vmem, size = 0x2000, scoped, tag = 'input window, operand 0']
    #allocation4 [shape = 'u8[8192]{0}', space=vmem, size = 0x2000, scoped, tag = 'input window, operand 1']
    loop: start=0, step=1, limit=6
    $region2: #{barlow_twins_loss.5} parent=1 // loop_pre_header
      _
    $region3: #{barlow_twins_loss.5} parent=1 // loop_header
      %s8 = sphi 0, %s12
      %p9 = scmp.ge.s32.totalorder %s8, 6
      %s15 = sphi 0, %s34
      %s16 = sphi 0, %s30
      %s17 = sphi 0, %s26
      %s18 = sphi 0, %s15
      %s19 = sphi 0, %s16
      %s20 = sphi 0, %s17
      %s21 = sphi 0, %s18
      %s22 = sphi 0, %s19
      %s23 = sphi 0, %s20
      %s39 = sphi 0, %s41
      %s42 = sphi 0, %s39
      %s43 = sphi 0, %s42
      %s59 = sphi 0, %s43
      %s67 = sphi 0, %s69
      %s70 = sphi 0, %s67
      %s71 = sphi 0, %s70
      %s87 = sphi 0, %s71
      %s95 = sphi 0, %s97
      %s98 = sphi 0, %s95
      %s99 = sphi 0, %s98
      %s115 = sphi 0, %s99
    $region4: #{barlow_twins_loss.5} parent=1 // loop_header_branch
      %11 = sbr.rel (%p9) target = $region8
    $region5: #{barlow_twins_loss.5} parent=1 // loop_body
      %s13 = ssub.s32 %s8, 1
      %s14 = ssub.s32 %s8, 2
      %s24 = sadd.s32 1, %s17
      %p25 = scmp.ge.s32.totalorder %s24, 1
      %s26 = scalar_select %p25, 0, %s24
      %s27 = sadd.s32 1, %s16
      %s28 = scalar_select %p25, %s27, %s16
      %p29 = scmp.ge.s32.totalorder %s28, 2
      %s30 = scalar_select %p29, 0, %s28
      %s31 = sadd.s32 1, %s15
      %s32 = scalar_select %p29, %s31, %s15
      %p33 = scmp.ge.s32.totalorder %s32, 2
      %s34 = scalar_select %p33, 0, %s32
      %s35 = ssub.s32 %s17, %s26
      %s36 = ssub.s32 %s15, %s34
      %s37 = sor.u32 %s35, %s36
      %p38 = scmp.eq.s32.totalorder %s37, 0
      %s40 = sadd.s32 %s39, 1
      %s41 = scalar_select %p38, %s39, %s40
      %p44 = pneg %p38
      %p45 = scmp.eq.s32.totalorder %s8, 3
      %p46 = por %p44, %p45
      %p47 = scmp.ne.s32.totalorder %s39, %s42
      %p48 = scmp.eq.s32.totalorder %s8, 0
      %p49 = por %p47, %p48
      %p50 = scmp.ne.s32.totalorder %s39, %s42
      %p51 = scmp.eq.s32.totalorder %s13, 3
      %p52 = por %p50, %p51
      %p53 = scmp.ne.s32.totalorder %s42, %s43
      %p54 = scmp.eq.s32.totalorder %s13, 0
      %p55 = por %p53, %p54
      %p56 = scmp.ne.s32.totalorder %s42, %s43
      %p57 = scmp.eq.s32.totalorder %s14, 3
      %p58 = por %p56, %p57
      %p60 = scmp.ne.s32.totalorder %s43, %s59
      %p61 = scmp.eq.s32.totalorder %s14, 0
      %p62 = por %p60, %p61
      %s63 = ssub.s32 %s17, %s26
      %s64 = ssub.s32 %s16, %s30
      %s65 = sor.u32 %s63, %s64
      %p66 = scmp.eq.s32.totalorder %s65, 0
      %s68 = sadd.s32 %s67, 1
      %s69 = scalar_select %p66, %s67, %s68
      %p72 = pneg %p66
      %p73 = scmp.eq.s32.totalorder %s8, 3
      %p74 = por %p72, %p73
      %p75 = scmp.ne.s32.totalorder %s67, %s70
      %p76 = scmp.eq.s32.totalorder %s8, 0
      %p77 = por %p75, %p76
      %p78 = scmp.ne.s32.totalorder %s67, %s70
      %p79 = scmp.eq.s32.totalorder %s13, 3
      %p80 = por %p78, %p79
      %p81 = scmp.ne.s32.totalorder %s70, %s71
      %p82 = scmp.eq.s32.totalorder %s13, 0
      %p83 = por %p81, %p82
      %p84 = scmp.ne.s32.totalorder %s70, %s71
      %p85 = scmp.eq.s32.totalorder %s14, 3
      %p86 = por %p84, %p85
      %p88 = scmp.ne.s32.totalorder %s71, %s87
      %p89 = scmp.eq.s32.totalorder %s14, 0
      %p90 = por %p88, %p89
      %s91 = ssub.s32 %s15, %s34
      %s92 = ssub.s32 %s16, %s30
      %s93 = sor.u32 %s91, %s92
      %p94 = scmp.eq.s32.totalorder %s93, 0
      %s96 = sadd.s32 %s95, 1
      %s97 = scalar_select %p94, %s95, %s96
      %p100 = pneg %p94
      %p101 = scmp.eq.s32.totalorder %s8, 3
      %p102 = por %p100, %p101
      %p103 = scmp.ne.s32.totalorder %s95, %s98
      %p104 = scmp.eq.s32.totalorder %s8, 0
      %p105 = por %p103, %p104
      %p106 = scmp.ne.s32.totalorder %s95, %s98
      %p107 = scmp.eq.s32.totalorder %s13, 3
      %p108 = por %p106, %p107
      %p109 = scmp.ne.s32.totalorder %s98, %s99
      %p110 = scmp.eq.s32.totalorder %s13, 0
      %p111 = por %p109, %p110
      %p112 = scmp.ne.s32.totalorder %s98, %s99
      %p113 = scmp.eq.s32.totalorder %s14, 3
      %p114 = por %p112, %p113
      %p116 = scmp.ne.s32.totalorder %s99, %s115
      %p117 = scmp.eq.s32.totalorder %s14, 0
      %p118 = por %p116, %p117
      %p119 = scmp.le.s32.totalorder 1, %s8
      %p120 = scmp.lt.s32.totalorder %s8, 5
      %p121 = pnand %p119, %p120
      %p122 = pneg %p121
      // Predicated region
      $region9: #{barlow_twins_loss.5} parent=5 // pred_check
        _
      $region10: #{barlow_twins_loss.5} parent=5 // pred_check_branch
        %124 = sbr.rel (%p121) target = $region12
      $region11: #{barlow_twins_loss.5} parent=5 // pred_region
        %s125 = ssub.s32 %s8, 1
      $region12: #{barlow_twins_loss.5} parent=5 // pred_fallthru
        _
      %p126 = scmp.lt.s32.totalorder %s8, 4
      // Predicated region
      $region13: #{barlow_twins_loss.5} parent=5 // pred_check
        %p127 = pneg %p126
      $region14: #{barlow_twins_loss.5} parent=5 // pred_check_branch
        %129 = sbr.rel (%p127) target = $region16
      $region15: #{barlow_twins_loss.5} parent=5 // pred_region
        // Predicated region
        $region17: #{barlow_twins_loss.5} parent=15 // pred_check
          %p130 = pneg %p49
        $region18: #{barlow_twins_loss.5} parent=15 // pred_check_branch
          %132 = sbr.rel (%p130) target = $region20
        $region19: #{barlow_twins_loss.5} parent=15 // pred_region
          %s133 = sand.u32 %s39, 1
          %s134 = sand.u32 %s39, 1
          %s135 = smul.addr %s134, 8
          %s136 = scalar_lea.vmem [#allocation3], %s135
          %s137 = smul.u32 2, %s17
          %s138 = smul.addr %s137, 2
          %s139 = sadd.s32 %s15, %s138
          %s140 = smul.addr %s139, 4
          %s141 = scalar_lea.vmem %s0, %s140
          // Predicated region
          $region21: #{barlow_twins_loss.5} parent=19 // pred_check
            _
          $region22: #{barlow_twins_loss.5} parent=19 // pred_check_branch
            %143 = sbr.rel (0) target = $region24
          $region23: #{barlow_twins_loss.5} parent=19 // pred_region
            // Predicated region
            $region25: #{barlow_twins_loss.5} parent=23 // pred_check
              _
            $region26: #{barlow_twins_loss.5} parent=23 // pred_check_branch
              %145 = sbr.rel target = $region28
            $region27: #{barlow_twins_loss.5} parent=23 // pred_region
              // Predicated region
              $region40: #{barlow_twins_loss.5} parent=27 // pred_check
                _
              $region41: #{barlow_twins_loss.5} parent=27 // pred_check_branch
                %162 = sbr.rel (0) target = $region43
              $region42: #{barlow_twins_loss.5} parent=27 // pred_region
                loop: start=0, step=1, limit=1
                $region44: #{barlow_twins_loss.5} parent=42 // loop_pre_header
                  _
                $region45: #{barlow_twins_loss.5} parent=42 // loop_header
                  %s164 = sphi 0, %s168
                  %p165 = scmp.ge.s32.totalorder %s164, 1
                  %s169 = sphi %s141, %s141
                  %s170 = sphi %s136, %s136
                $region46: #{barlow_twins_loss.5} parent=42 // loop_header_branch
                  %167 = sbr.rel (%p165) target = $region50
                $region47: #{barlow_twins_loss.5} parent=42 // loop_body
                  _
                $region48: #{barlow_twins_loss.5} parent=42 // loop_footer
                  %s168 = sadd.s32 1, %s164
                $region49: #{barlow_twins_loss.5} parent=42 // loop_footer_branch
                  %163 = sbr.rel target = $region45
                $region50: #{barlow_twins_loss.5} parent=42 // loop_exit
                  _
                loop: start=0, step=1, limit=1
                $region51: #{barlow_twins_loss.5} parent=42 // loop_pre_header
                  _
                $region52: #{barlow_twins_loss.5} parent=42 // loop_header
                  %s173 = sphi 0, %s177
                  %p174 = scmp.ge.s32.totalorder %s173, 1
                  %s178 = sphi %s141, %s141
                  %s179 = sphi %s136, %s136
                $region53: #{barlow_twins_loss.5} parent=42 // loop_header_branch
                  %176 = sbr.rel (%p174) target = $region57
                $region54: #{barlow_twins_loss.5} parent=42 // loop_body
                  %v180 = vld [vmem:[%s178] sm:$0xf]
                  %181 = vst [vmem:[%s179] sm:$0xf] %v180
                  %v182 = vld [vmem:[%s178 + $0x8] sm:$0xf]
                  %183 = vst [vmem:[%s179 + $0x4] sm:$0xf] %v182
                $region55: #{barlow_twins_loss.5} parent=42 // loop_footer
                  %s177 = sadd.s32 1, %s173
                $region56: #{barlow_twins_loss.5} parent=42 // loop_footer_branch
                  %172 = sbr.rel target = $region52
                $region57: #{barlow_twins_loss.5} parent=42 // loop_exit
                  _
              $region43: #{barlow_twins_loss.5} parent=27 // pred_fallthru
                _
            $region28: #{barlow_twins_loss.5} parent=23 // pred_fallthru
              _
            // Predicated region
            $region29: #{barlow_twins_loss.5} parent=23 // pred_check
              _
            $region30: #{barlow_twins_loss.5} parent=23 // pred_check_branch
              %147 = sbr.rel (0) target = $region32
            $region31: #{barlow_twins_loss.5} parent=23 // pred_region
              loop: start=0, step=1, limit=1
              $region33: #{barlow_twins_loss.5} parent=31 // loop_pre_header
                _
              $region34: #{barlow_twins_loss.5} parent=31 // loop_header
                %s150 = sphi 0, %s154
                %p151 = scmp.ge.s32.totalorder %s150, 1
                %s155 = sphi %s141, %s141
                %s156 = sphi %s136, %s136
              $region35: #{barlow_twins_loss.5} parent=31 // loop_header_branch
                %153 = sbr.rel (%p151) target = $region39
              $region36: #{barlow_twins_loss.5} parent=31 // loop_body
                %v157 = vld [vmem:[%s155] sm:$0xf]
                %158 = vst [vmem:[%s156] sm:$0xf] %v157
                %v159 = vld [vmem:[%s155 + $0x8] sm:$0xf]
                %160 = vst [vmem:[%s156 + $0x4] sm:$0xf] %v159
              $region37: #{barlow_twins_loss.5} parent=31 // loop_footer
                %s154 = sadd.s32 1, %s150
              $region38: #{barlow_twins_loss.5} parent=31 // loop_footer_branch
                %149 = sbr.rel target = $region34
              $region39: #{barlow_twins_loss.5} parent=31 // loop_exit
                _
            $region32: #{barlow_twins_loss.5} parent=23 // pred_fallthru
              _
          $region24: #{barlow_twins_loss.5} parent=19 // pred_fallthru
            _
          %184 = vnop
        $region20: #{barlow_twins_loss.5} parent=15 // pred_fallthru
          _
        // Predicated region
        $region58: #{barlow_twins_loss.5} parent=15 // pred_check
          %p185 = pneg %p77
        $region59: #{barlow_twins_loss.5} parent=15 // pred_check_branch
          %187 = sbr.rel (%p185) target = $region61
        $region60: #{barlow_twins_loss.5} parent=15 // pred_region
          %s188 = sand.u32 %s67, 1
          %s189 = sand.u32 %s67, 1
          %s190 = smul.addr %s189, 8
          %s191 = scalar_lea.vmem [#allocation4], %s190
          %s192 = smul.u32 2, %s17
          %s193 = smul.addr %s192, 2
          %s194 = sadd.s32 %s16, %s193
          %s195 = smul.addr %s194, 4
          %s196 = scalar_lea.vmem %s1, %s195
          // Predicated region
          $region62: #{barlow_twins_loss.5} parent=60 // pred_check
            _
          $region63: #{barlow_twins_loss.5} parent=60 // pred_check_branch
            %198 = sbr.rel (0) target = $region65
          $region64: #{barlow_twins_loss.5} parent=60 // pred_region
            // Predicated region
            $region66: #{barlow_twins_loss.5} parent=64 // pred_check
              _
            $region67: #{barlow_twins_loss.5} parent=64 // pred_check_branch
              %200 = sbr.rel target = $region69
            $region68: #{barlow_twins_loss.5} parent=64 // pred_region
              // Predicated region
              $region81: #{barlow_twins_loss.5} parent=68 // pred_check
                _
              $region82: #{barlow_twins_loss.5} parent=68 // pred_check_branch
                %217 = sbr.rel (0) target = $region84
              $region83: #{barlow_twins_loss.5} parent=68 // pred_region
                loop: start=0, step=1, limit=1
                $region85: #{barlow_twins_loss.5} parent=83 // loop_pre_header
                  _
                $region86: #{barlow_twins_loss.5} parent=83 // loop_header
                  %s219 = sphi 0, %s223
                  %p220 = scmp.ge.s32.totalorder %s219, 1
                  %s224 = sphi %s196, %s196
                  %s225 = sphi %s191, %s191
                $region87: #{barlow_twins_loss.5} parent=83 // loop_header_branch
                  %222 = sbr.rel (%p220) target = $region91
                $region88: #{barlow_twins_loss.5} parent=83 // loop_body
                  _
                $region89: #{barlow_twins_loss.5} parent=83 // loop_footer
                  %s223 = sadd.s32 1, %s219
                $region90: #{barlow_twins_loss.5} parent=83 // loop_footer_branch
                  %218 = sbr.rel target = $region86
                $region91: #{barlow_twins_loss.5} parent=83 // loop_exit
                  _
                loop: start=0, step=1, limit=1
                $region92: #{barlow_twins_loss.5} parent=83 // loop_pre_header
                  _
                $region93: #{barlow_twins_loss.5} parent=83 // loop_header
                  %s228 = sphi 0, %s232
                  %p229 = scmp.ge.s32.totalorder %s228, 1
                  %s233 = sphi %s196, %s196
                  %s234 = sphi %s191, %s191
                $region94: #{barlow_twins_loss.5} parent=83 // loop_header_branch
                  %231 = sbr.rel (%p229) target = $region98
                $region95: #{barlow_twins_loss.5} parent=83 // loop_body
                  %v235 = vld [vmem:[%s233] sm:$0xf]
                  %236 = vst [vmem:[%s234] sm:$0xf] %v235
                  %v237 = vld [vmem:[%s233 + $0x8] sm:$0xf]
                  %238 = vst [vmem:[%s234 + $0x4] sm:$0xf] %v237
                $region96: #{barlow_twins_loss.5} parent=83 // loop_footer
                  %s232 = sadd.s32 1, %s228
                $region97: #{barlow_twins_loss.5} parent=83 // loop_footer_branch
                  %227 = sbr.rel target = $region93
                $region98: #{barlow_twins_loss.5} parent=83 // loop_exit
                  _
              $region84: #{barlow_twins_loss.5} parent=68 // pred_fallthru
                _
            $region69: #{barlow_twins_loss.5} parent=64 // pred_fallthru
              _
            // Predicated region
            $region70: #{barlow_twins_loss.5} parent=64 // pred_check
              _
            $region71: #{barlow_twins_loss.5} parent=64 // pred_check_branch
              %202 = sbr.rel (0) target = $region73
            $region72: #{barlow_twins_loss.5} parent=64 // pred_region
              loop: start=0, step=1, limit=1
              $region74: #{barlow_twins_loss.5} parent=72 // loop_pre_header
                _
              $region75: #{barlow_twins_loss.5} parent=72 // loop_header
                %s205 = sphi 0, %s209
                %p206 = scmp.ge.s32.totalorder %s205, 1
                %s210 = sphi %s196, %s196
                %s211 = sphi %s191, %s191
              $region76: #{barlow_twins_loss.5} parent=72 // loop_header_branch
                %208 = sbr.rel (%p206) target = $region80
              $region77: #{barlow_twins_loss.5} parent=72 // loop_body
                %v212 = vld [vmem:[%s210] sm:$0xf]
                %213 = vst [vmem:[%s211] sm:$0xf] %v212
                %v214 = vld [vmem:[%s210 + $0x8] sm:$0xf]
                %215 = vst [vmem:[%s211 + $0x4] sm:$0xf] %v214
              $region78: #{barlow_twins_loss.5} parent=72 // loop_footer
                %s209 = sadd.s32 1, %s205
              $region79: #{barlow_twins_loss.5} parent=72 // loop_footer_branch
                %204 = sbr.rel target = $region75
              $region80: #{barlow_twins_loss.5} parent=72 // loop_exit
                _
            $region73: #{barlow_twins_loss.5} parent=64 // pred_fallthru
              _
          $region65: #{barlow_twins_loss.5} parent=60 // pred_fallthru
            _
          %239 = vnop
        $region61: #{barlow_twins_loss.5} parent=15 // pred_fallthru
          _
      $region16: #{barlow_twins_loss.5} parent=5 // pred_fallthru
        _
      %p240 = scmp.le.s32.totalorder 1, %s8
      %p241 = scmp.lt.s32.totalorder %s8, 5
      %p242 = pnand %p240, %p241
      %p243 = pneg %p242
      // Predicated region
      $region99: #{barlow_twins_loss.5} parent=5 // pred_check
        _
      $region100: #{barlow_twins_loss.5} parent=5 // pred_check_branch
        %245 = sbr.rel (%p242) target = $region102
      $region101: #{barlow_twins_loss.5} parent=5 // pred_region
        %s246 = ssub.s32 %s8, 1
        %s247 = sand.u32 %s42, 1
        %s248 = sand.u32 %s42, 1
        %s249 = smul.addr %s248, 8
        %s250 = scalar_lea.vmem [#allocation3], %s249
        // Predicated region
        $region103: #{barlow_twins_loss.5} parent=101 // pred_check
          %p251 = pneg %p55
        $region104: #{barlow_twins_loss.5} parent=101 // pred_check_branch
          %253 = sbr.rel (%p251) target = $region106
        $region105: #{barlow_twins_loss.5} parent=101 // pred_region
          _
        $region106: #{barlow_twins_loss.5} parent=101 // pred_fallthru
          _
        %s254 = sand.u32 %s70, 1
        %s255 = sand.u32 %s70, 1
        %s256 = smul.addr %s255, 8
        %s257 = scalar_lea.vmem [#allocation4], %s256
        // Predicated region
        $region107: #{barlow_twins_loss.5} parent=101 // pred_check
          %p258 = pneg %p83
        $region108: #{barlow_twins_loss.5} parent=101 // pred_check_branch
          %260 = sbr.rel (%p258) target = $region110
        $region109: #{barlow_twins_loss.5} parent=101 // pred_region
          _
        $region110: #{barlow_twins_loss.5} parent=101 // pred_fallthru
          _
        %s261 = sand.u32 %s42, 1
        %s262 = sand.u32 %s42, 1
        %s263 = smul.addr %s262, 8
        %s264 = scalar_lea.vmem [#allocation3], %s263
        %p265 = pneg %p55
        %p266 = pneg %p52
        %s267 = sand.u32 %s70, 1
        %s268 = sand.u32 %s70, 1
        %s269 = smul.addr %s268, 8
        %s270 = scalar_lea.vmem [#allocation4], %s269
        %p271 = pneg %p83
        %p272 = pneg %p80
        %p273 = pneg %p111
        %p274 = pneg %p108
        %p275 = scmp.lt.s32.totalorder %s18, 1
        %s276 = scalar_select %p275, %s18, 1
        %p277 = scmp.lt.s32.totalorder %s19, 1
        %s278 = scalar_select %p277, %s19, 1
        %s279 = smul.addr %s276, 2
        %s280 = sadd.s32 %s278, %s279
        %s281 = smul.addr %s280, 8
        %s282 = scalar_lea.vmem %s2, %s281
        %s283 = smul.u32 2, %s20
        %s284 = smul.u32 2, %s20
        %p285 = scmp.lt.s32.totalorder %s18, 1
        %s286 = scalar_select %p285, %s18, 1
        %p287 = scmp.lt.s32.totalorder %s19, 1
        %s288 = scalar_select %p287, %s19, 1
        %s289 = smul.addr %s286, 2
        %s290 = sadd.s32 %s288, %s289
        %s291 = smul.addr %s290, 8
        %s292 = scalar_lea.vmem %s2, %s291
        %p294 = scmp.eq.s32.totalorder %s20, 0
        // Predicated region
        $region111: #{barlow_twins_loss.5} parent=101 // pred_check
          %p295 = pneg %p294
        $region112: #{barlow_twins_loss.5} parent=101 // pred_check_branch
          %297 = sbr.rel (%p295) target = $region114
        $region113: #{barlow_twins_loss.5} parent=101 // pred_region
          %298 = vst [vmem:[#allocation2] sm:$0xff] 0.0
          %299 = vst [vmem:[#allocation2 + $0x8] sm:$0xff] 0.0
          %300 = vst [vmem:[#allocation2 + $0x10] sm:$0xff] 0.0
          %301 = vst [vmem:[#allocation2 + $0x18] sm:$0xff] 0.0
          %302 = vst [vmem:[#allocation2 + $0x20] sm:$0xff] 0.0
          %303 = vst [vmem:[#allocation2 + $0x28] sm:$0xff] 0.0
          %304 = vst [vmem:[#allocation2 + $0x30] sm:$0xff] 0.0
          %305 = vst [vmem:[#allocation2 + $0x38] sm:$0xff] 0.0
          %306 = vst [vmem:[#allocation2 + $0x40] sm:$0xff] 0.0
          %307 = vst [vmem:[#allocation2 + $0x48] sm:$0xff] 0.0
          %308 = vst [vmem:[#allocation2 + $0x50] sm:$0xff] 0.0
          %309 = vst [vmem:[#allocation2 + $0x58] sm:$0xff] 0.0
          %310 = vst [vmem:[#allocation2 + $0x60] sm:$0xff] 0.0
          %311 = vst [vmem:[#allocation2 + $0x68] sm:$0xff] 0.0
          %312 = vst [vmem:[#allocation2 + $0x70] sm:$0xff] 0.0
          %313 = vst [vmem:[#allocation2 + $0x78] sm:$0xff] 0.0
        $region114: #{barlow_twins_loss.5} parent=101 // pred_fallthru
          _
        %v314 = vld [vmem:[#allocation2] sm:$0xff]
        %v315 = vld [vmem:[#allocation2 + $0x8] sm:$0xff]
        %v316 = vld [vmem:[#allocation2 + $0x10] sm:$0xff]
        %v317 = vld [vmem:[#allocation2 + $0x18] sm:$0xff]
        %v318 = vld [vmem:[#allocation2 + $0x20] sm:$0xff]
        %v319 = vld [vmem:[#allocation2 + $0x28] sm:$0xff]
        %v320 = vld [vmem:[#allocation2 + $0x30] sm:$0xff]
        %v321 = vld [vmem:[#allocation2 + $0x38] sm:$0xff]
        %v322 = vld [vmem:[#allocation2 + $0x40] sm:$0xff]
        %v323 = vld [vmem:[#allocation2 + $0x48] sm:$0xff]
        %v324 = vld [vmem:[#allocation2 + $0x50] sm:$0xff]
        %v325 = vld [vmem:[#allocation2 + $0x58] sm:$0xff]
        %v326 = vld [vmem:[#allocation2 + $0x60] sm:$0xff]
        %v327 = vld [vmem:[#allocation2 + $0x68] sm:$0xff]
        %v328 = vld [vmem:[#allocation2 + $0x70] sm:$0xff]
        %v329 = vld [vmem:[#allocation2 + $0x78] sm:$0xff]
        %v330 = vld [vmem:[%s250] sm:$0xf]
        %v331 = vld [vmem:[%s250 + $0x4] sm:$0xf]
        %v332 = vld [vmem:[%s257] sm:$0xf]
        %v333 = vld [vmem:[%s257 + $0x4] sm:$0xf]
        %v336 = vunpack.c.l.b16 %v330
        %v337 = vunpack.c.l.b16 %v331
        %v338 = vpack.c.b16 %v337, %v336
        %340 = vxpose.xlu0.c.b16.start [1/8] %v338, 128
        %341 = vxpose.xlu0.c.b16.cont [2/8] 0, 128
        %342 = vxpose.xlu0.c.b16.cont [3/8] 0, 128
        %343 = vxpose.xlu0.c.b16.cont [4/8] 0, 128
        %344 = vxpose.xlu0.c.b16.cont [5/8] 0, 128
        %345 = vxpose.xlu0.c.b16.cont [6/8] 0, 128
        %346 = vxpose.xlu0.c.b16.cont [7/8] 0, 128
        %347 = vxpose.xlu0.c.b16.end [8/8] 0, 128
        %v348 = vpop.trf.xlu0
        %v349 = vpop.trf.xlu0
        %v350 = vpop.trf.xlu0
        %v351 = vpop.trf.xlu0
        %v352 = vpop.trf.xlu0
        %v353 = vpop.trf.xlu0
        %v354 = vpop.trf.xlu0
        %v355 = vpop.trf.xlu0
        %v358 = vunpack.c.l.b16 %v332
        %v359 = vunpack.c.l.b16 %v333
        %v360 = vpack.c.b16 %v359, %v358
        %vm362 = vcmask 130048
        %v364 = vsel %vm362, %v348, 0
        %v367 = vsel %vm362, %v349, 0
        %v370 = vsel %vm362, %v350, 0
        %v373 = vsel %vm362, %v351, 0
        %v376 = vsel %vm362, %v352, 0
        %v379 = vsel %vm362, %v353, 0
        %v382 = vsel %vm362, %v354, 0
        %v385 = vsel %vm362, %v355, 0
        %387 = vmatprep.subr.bf16.mxu0 0
        %388 = vmatpush1.bf16.msra.mxu0 %v360
        %389 = vmatprep.subr.bf16.mxu0 0
        %390 = vmatpush1.bf16.msra.mxu0 0
        %391 = vmatprep.subr.bf16.mxu0 0
        %392 = vmatpush1.bf16.msra.mxu0 0
        %393 = vmatprep.subr.bf16.mxu0 0
        %394 = vmatpush1.bf16.msra.mxu0 0
        %395 = vmatprep.subr.bf16.mxu0 0
        %396 = vmatpush1.bf16.msra.mxu0 0
        %397 = vmatprep.subr.bf16.mxu0 0
        %398 = vmatpush1.bf16.msra.mxu0 0
        %399 = vmatprep.subr.bf16.mxu0 0
        %400 = vmatpush1.bf16.msra.mxu0 0
        %401 = vmatprep.subr.bf16.mxu0 0
        %402 = vmatpush1.bf16.msra.mxu0 0
        %403 = vmatprep.subr.bf16.mxu0 0
        %404 = vmatpush1.bf16.msra.mxu0 0
        %405 = vmatprep.subr.bf16.mxu0 0
        %406 = vmatpush1.bf16.msra.mxu0 0
        %407 = vmatprep.subr.bf16.mxu0 0
        %408 = vmatpush1.bf16.msra.mxu0 0
        %409 = vmatprep.subr.bf16.mxu0 0
        %410 = vmatpush1.bf16.msra.mxu0 0
        %411 = vmatprep.subr.bf16.mxu0 0
        %412 = vmatpush1.bf16.msra.mxu0 0
        %413 = vmatprep.subr.bf16.mxu0 0
        %414 = vmatpush1.bf16.msra.mxu0 0
        %415 = vmatprep.subr.bf16.mxu0 0
        %416 = vmatpush1.bf16.msra.mxu0 0
        %417 = vmatprep.subr.bf16.mxu0 0
        %418 = vmatpush1.bf16.msra.mxu0 0
        %419 = vmatprep.mubr.bf16.mxu0 0
        %420 = vmatmul.mubr.bf16.gmra.mrb[0].mxu0 %v364
        %v421 = vpop.f32.mrb[0].mxu0
        %v422 = vadd.f32 0.0, %v421
        %v423 = vpop.f32.mrb[0].mxu0
        %v424 = vpop.f32.mrb[0].mxu0
        %v425 = vadd.f32 0.0, %v424
        %v426 = vpop.f32.mrb[0].mxu0
        %427 = vmatprep.mubr.bf16.mxu0 0
        %428 = vmatmul.mubr.bf16.gmra.mrb[0].mxu0 %v367
        %v429 = vpop.f32.mrb[0].mxu0
        %v430 = vadd.f32 0.0, %v429
        %v431 = vpop.f32.mrb[0].mxu0
        %v432 = vpop.f32.mrb[0].mxu0
        %v433 = vadd.f32 0.0, %v432
        %v434 = vpop.f32.mrb[0].mxu0
        %435 = vmatprep.mubr.bf16.mxu0 0
        %436 = vmatmul.mubr.bf16.gmra.mrb[0].mxu0 %v370
        %v437 = vpop.f32.mrb[0].mxu0
        %v438 = vadd.f32 0.0, %v437
        %v439 = vpop.f32.mrb[0].mxu0
        %v440 = vpop.f32.mrb[0].mxu0
        %v441 = vadd.f32 0.0, %v440
        %v442 = vpop.f32.mrb[0].mxu0
        %443 = vmatprep.mubr.bf16.mxu0 0
        %444 = vmatmul.mubr.bf16.gmra.mrb[0].mxu0 %v373
        %v445 = vpop.f32.mrb[0].mxu0
        %v446 = vadd.f32 0.0, %v445
        %v447 = vpop.f32.mrb[0].mxu0
        %v448 = vpop.f32.mrb[0].mxu0
        %v449 = vadd.f32 0.0, %v448
        %v450 = vpop.f32.mrb[0].mxu0
        %451 = vmatprep.mubr.bf16.mxu0 0
        %452 = vmatmul.mubr.bf16.gmra.mrb[0].mxu0 %v376
        %v453 = vpop.f32.mrb[0].mxu0
        %v454 = vadd.f32 0.0, %v453
        %v455 = vpop.f32.mrb[0].mxu0
        %v456 = vpop.f32.mrb[0].mxu0
        %v457 = vadd.f32 0.0, %v456
        %v458 = vpop.f32.mrb[0].mxu0
        %459 = vmatprep.mubr.bf16.mxu0 0
        %460 = vmatmul.mubr.bf16.gmra.mrb[0].mxu0 %v379
        %v461 = vpop.f32.mrb[0].mxu0
        %v462 = vadd.f32 0.0, %v461
        %v463 = vpop.f32.mrb[0].mxu0
        %v464 = vpop.f32.mrb[0].mxu0
        %v465 = vadd.f32 0.0, %v464
        %v466 = vpop.f32.mrb[0].mxu0
        %467 = vmatprep.mubr.bf16.mxu0 0
        %468 = vmatmul.mubr.bf16.gmra.mrb[0].mxu0 %v382
        %v469 = vpop.f32.mrb[0].mxu0
        %v470 = vadd.f32 0.0, %v469
        %v471 = vpop.f32.mrb[0].mxu0
        %v472 = vpop.f32.mrb[0].mxu0
        %v473 = vadd.f32 0.0, %v472
        %v474 = vpop.f32.mrb[0].mxu0
        %475 = vmatprep.mubr.bf16.mxu0 0
        %476 = vmatmul.mubr.bf16.gmra.mrb[0].mxu0 %v385
        %v477 = vpop.f32.mrb[0].mxu0
        %v478 = vadd.f32 0.0, %v477
        %v479 = vpop.f32.mrb[0].mxu0
        %v480 = vpop.f32.mrb[0].mxu0
        %v481 = vadd.f32 0.0, %v480
        %v482 = vpop.f32.mrb[0].mxu0
        %483 = vdwg.mxu0
        %v484 = vadd.f32 %v314, %v422
        %v485 = vadd.f32 %v315, %v425
        %v486 = vadd.f32 %v316, %v430
        %v487 = vadd.f32 %v317, %v433
        %v488 = vadd.f32 %v318, %v438
        %v489 = vadd.f32 %v319, %v441
        %v490 = vadd.f32 %v320, %v446
        %v491 = vadd.f32 %v321, %v449
        %v492 = vadd.f32 %v322, %v454
        %v493 = vadd.f32 %v323, %v457
        %v494 = vadd.f32 %v324, %v462
        %v495 = vadd.f32 %v325, %v465
        %v496 = vadd.f32 %v326, %v470
        %v497 = vadd.f32 %v327, %v473
        %v498 = vadd.f32 %v328, %v478
        %v499 = vadd.f32 %v329, %v481
        %500 = vst [vmem:[#allocation2] sm:$0xff] %v484
        %501 = vst [vmem:[#allocation2 + $0x8] sm:$0xff] %v485
        %502 = vst [vmem:[#allocation2 + $0x10] sm:$0xff] %v486
        %503 = vst [vmem:[#allocation2 + $0x18] sm:$0xff] %v487
        %504 = vst [vmem:[#allocation2 + $0x20] sm:$0xff] %v488
        %505 = vst [vmem:[#allocation2 + $0x28] sm:$0xff] %v489
        %506 = vst [vmem:[#allocation2 + $0x30] sm:$0xff] %v490
        %507 = vst [vmem:[#allocation2 + $0x38] sm:$0xff] %v491
        %508 = vst [vmem:[#allocation2 + $0x40] sm:$0xff] %v492
        %509 = vst [vmem:[#allocation2 + $0x48] sm:$0xff] %v493
        %510 = vst [vmem:[#allocation2 + $0x50] sm:$0xff] %v494
        %511 = vst [vmem:[#allocation2 + $0x58] sm:$0xff] %v495
        %512 = vst [vmem:[#allocation2 + $0x60] sm:$0xff] %v496
        %513 = vst [vmem:[#allocation2 + $0x68] sm:$0xff] %v497
        %514 = vst [vmem:[#allocation2 + $0x70] sm:$0xff] %v498
        %515 = vst [vmem:[#allocation2 + $0x78] sm:$0xff] %v499
        // Predicated region
        $region115: #{barlow_twins_loss.5} parent=101 // pred_check
          %p516 = pneg %p294
        $region116: #{barlow_twins_loss.5} parent=101 // pred_check_branch
          %518 = sbr.rel (%p516) target = $region118
        $region117: #{barlow_twins_loss.5} parent=101 // pred_region
          loop: start=0, step=1, limit=16
          $region119: #{barlow_twins_loss.5} parent=117 // loop_pre_header
            _
          $region120: #{barlow_twins_loss.5} parent=117 // loop_header
            %s520 = sphi 0, %s524
            %p521 = scmp.ge.s32.totalorder %s520, 16
            %v525 = vphi 0.0, %v536
          $region121: #{barlow_twins_loss.5} parent=117 // loop_header_branch
            %523 = sbr.rel (%p521) target = $region125
          $region122: #{barlow_twins_loss.5} parent=117 // loop_body
            %s526 = smul.u32 %s520, 8
            %s527 = scalar_lea.vmem [#allocation2], %s526
            %v528 = vld [vmem:[%s527] sm:$0xff]
            %v529 = vmul.f32 %v528, %v528
            %v530 = vrot.slane %v529, 4
            %v531 = vadd.f32 %v529, %v530
            %v532 = vrot.slane %v531, 2
            %v533 = vadd.f32 %v531, %v532
            %v534 = vrot.slane %v533, 1
            %v535 = vadd.f32 %v533, %v534
            %v536 = vadd.f32 %v525, %v535
          $region123: #{barlow_twins_loss.5} parent=117 // loop_footer
            %s524 = sadd.s32 1, %s520
          $region124: #{barlow_twins_loss.5} parent=117 // loop_footer_branch
            %519 = sbr.rel target = $region120
          $region125: #{barlow_twins_loss.5} parent=117 // loop_exit
            _
          %537 = vst [vmem:[%s292] sm:$0xff] %v525
        $region118: #{barlow_twins_loss.5} parent=101 // pred_fallthru
          _
        %p538 = scmp.lt.s32.totalorder %s18, 1
        %s539 = scalar_select %p538, %s18, 1
        %p540 = scmp.lt.s32.totalorder %s19, 1
        %s541 = scalar_select %p540, %s19, 1
        %s542 = smul.addr %s539, 2
        %s543 = sadd.s32 %s541, %s542
        %s544 = smul.addr %s543, 8
        %s545 = scalar_lea.vmem %s2, %s544
        // Predicated region
        $region126: #{barlow_twins_loss.5} parent=101 // pred_check
          %p546 = pneg %p108
        $region127: #{barlow_twins_loss.5} parent=101 // pred_check_branch
          %548 = sbr.rel (%p546) target = $region129
        $region128: #{barlow_twins_loss.5} parent=101 // pred_region
          _
        $region129: #{barlow_twins_loss.5} parent=101 // pred_fallthru
          _
      $region102: #{barlow_twins_loss.5} parent=5 // pred_fallthru
        _
      %p549 = scmp.le.s32.totalorder 2, %s8
      // Predicated region
      $region130: #{barlow_twins_loss.5} parent=5 // pred_check
        %p550 = pneg %p549
      $region131: #{barlow_twins_loss.5} parent=5 // pred_check_branch
        %552 = sbr.rel (%p550) target = $region133
      $region132: #{barlow_twins_loss.5} parent=5 // pred_region
        %s553 = ssub.s32 %s8, 2
        // Predicated region
        $region134: #{barlow_twins_loss.5} parent=132 // pred_check
          %p554 = pneg %p114
        $region135: #{barlow_twins_loss.5} parent=132 // pred_check_branch
          %556 = sbr.rel (%p554) target = $region137
        $region136: #{barlow_twins_loss.5} parent=132 // pred_region
          %p557 = scmp.lt.s32.totalorder %s21, 1
          %s558 = scalar_select %p557, %s21, 1
          %p559 = scmp.lt.s32.totalorder %s22, 1
          %s560 = scalar_select %p559, %s22, 1
          %s561 = smul.addr %s558, 2
          %s562 = sadd.s32 %s560, %s561
          %s563 = smul.addr %s562, 8
          %s564 = scalar_lea.vmem %s2, %s563
        $region137: #{barlow_twins_loss.5} parent=132 // pred_fallthru
          _
      $region133: #{barlow_twins_loss.5} parent=5 // pred_fallthru
        _
    $region6: #{barlow_twins_loss.5} parent=1 // loop_footer
      %s12 = sadd.s32 1, %s8
    $region7: #{barlow_twins_loss.5} parent=1 // loop_footer_branch
      %7 = sbr.rel target = $region3
    $region8: #{barlow_twins_loss.5} parent=1 // loop_exit
      _

</llo_original>
